<compile_context>
chip_gen: v7x
topology: tpu7x:2x2x1
jax: 0.10.0
libtpu: 0.0.40
codegen_flags: <defaults>
</compile_context>

<pallas_src>
import functools

import jax
import jax.numpy as jnp
from jax import lax
from jax.experimental import pallas as pl
from jax.experimental.pallas import tpu as pltpu


def _sft_kernel(q_ref, kv_ref, qin_ref, kin_ref, o_ref,
                l_sc, acc_sc, qn_sc, *, inv_sigma, valid_n, tk, mask_keys):
    """One (row_block, key_block) step of the SFT forward pass."""
    kblk = pl.program_id(1)

    @pl.when(kblk == 0)
    def _init():
        l_sc[...] = jnp.zeros_like(l_sc)
        acc_sc[...] = jnp.zeros_like(acc_sc)
        # Hoisted query normalization (constant across the key axis):
        # qn = x_q * inv_norm_q * (1 / sigma), computed once per row block.
        qn_sc[...] = (q_ref[...].astype(jnp.float32)
                      * (qin_ref[...].astype(jnp.float32) * inv_sigma))

    kv = kv_ref[...].astype(jnp.float32)           # (tk, Dp) raw value rows
    kn = kv * kin_ref[...].astype(jnp.float32)     # (tk, Dp) normalized keys

    # (tm, tk) scaled cosine similarity: contract the last dims directly
    # (transpose-free, no extra VMEM copy of kn).
    s = lax.dot_general(qn_sc[...], kn, (((1,), (1,)), ((), ())),
                        preferred_element_type=jnp.float32)

    # Fixed-shift softmax: exact because the true per-row max is 1/sigma
    # (diagonal cosine = 1).  No running max, no rescaling.
    p = jnp.exp(s - inv_sigma)
    if mask_keys:
        col = kblk * tk + lax.broadcasted_iota(jnp.int32, (1, tk), 1)
        p = jnp.where(col < valid_n, p, 0.0)

    l_sc[...] += jnp.sum(p, axis=1, keepdims=True)
    # Mix the *un-normalized* value rows (matches T @ emb_org).
    acc_sc[...] += jnp.dot(p, kv, preferred_element_type=jnp.float32)

    @pl.when(kblk == pl.num_programs(1) - 1)
    def _finalize():
        # Deferred softmax normalization: one reciprocal per row.
        inv_l = pl.reciprocal(l_sc[...], approx=False)
        o_ref[...] = (acc_sc[...] * inv_l).astype(o_ref.dtype)


def _round_up(a, b):
    return (a + b - 1) // b * b


def _round_down8(a):
    return max(8, a - a % 8)


def sft_forward(emb_org, sigma=0.1, *, block_q=512, block_k=256):
    n, d = emb_org.shape
    inv_sigma = 1.0 / float(sigma)
    itemsize = jnp.dtype(emb_org.dtype).itemsize

    # Lane-dense feature layout: pad the feature dim to a multiple of 128.
    # Zero columns do not change norms, similarities, or kept output columns.
    dp = max(_round_up(d, 128), 128)

    # ---- tile selection --------------------------------------------------
    n8 = _round_up(max(n, 8), 8)
    tk = min(_round_down8(block_k), n8)
    tm = min(_round_down8(block_q), n8)
    # Keep one tile a multiple of the other so one padded N serves both axes.
    if tm >= tk:
        tm -= tm % tk
    else:
        tk -= tk % tm

    # Chip-aware VMEM budget (v7x: 64 MiB/TC vs 128 MiB on v5e/v6e).
    try:
        vmem_cap = int(pltpu.get_tpu_info().vmem_capacity_bytes)
    except Exception:
        vmem_cap = 64 << 20  # conservative fallback (correct on all chips)
    budget = int(vmem_cap * 0.7)

    def tiles_bytes(tm_, tk_):
        b = 2 * itemsize * (tm_ * dp + tk_ * dp + tm_ * dp)  # q, kv, out (x2)
        b += 2 * 4 * (tm_ + tk_)                              # inv-norm tiles
        b += 4 * (2 * tm_ * dp + tm_)                         # acc, qn, l
        return b

    while tiles_bytes(tm, tk) > budget and (tm > 8 or tk > 8):
        if tm >= tk and tm > 8:
            tm = _round_down8(tm // 2)
        else:
            tk = _round_down8(tk // 2)
        if tm >= tk:
            tm -= tm % tk
        else:
            tk -= tk % tm

    # v7x megacore: keep >= 2 row blocks so the "parallel" axis can shard.
    n_pad = _round_up(n, max(tm, tk))
    if n_pad // tm < 2 and tm >= 2 * tk:
        tm = max(tk, (tm // 2) - (tm // 2) % tk)
        n_pad = _round_up(n, max(tm, tk))

    grid = (n_pad // tm, n_pad // tk)
    mask_keys = n_pad != n

    vmem_limit = min(max(int(1.25 * tiles_bytes(tm, tk)) + (4 << 20), 32 << 20),
                     int(vmem_cap * 0.9))

    # ---- inputs ------------------------------------------------------------
    xf = emb_org.astype(jnp.float32)
    # Per-row inverse norm precomputed once; clamping the squared sum at 1e-24
    # matches torch's norm.clamp(min=1e-12).
    inv_norm = lax.rsqrt(
        jnp.maximum(jnp.sum(xf * xf, axis=1, keepdims=True), 1e-24))

    x = emb_org
    if dp != d or n_pad != n:
        x = jnp.pad(emb_org, ((0, n_pad - n), (0, dp - d)))
    if n_pad != n:
        inv_norm = jnp.pad(inv_norm, ((0, n_pad - n), (0, 0)))

    kernel = functools.partial(
        _sft_kernel, inv_sigma=inv_sigma, valid_n=n, tk=tk, mask_keys=mask_keys)

    out = pl.pallas_call(
        kernel,
        out_shape=jax.ShapeDtypeStruct((n_pad, dp), emb_org.dtype),
        grid=grid,
        in_specs=[
            pl.BlockSpec((tm, dp), lambda i, k: (i, 0)),   # query rows
            pl.BlockSpec((tk, dp), lambda i, k: (k, 0)),   # key / value rows
            pl.BlockSpec((tm, 1), lambda i, k: (i, 0)),    # query inverse norms
            pl.BlockSpec((tk, 1), lambda i, k: (k, 0)),    # key inverse norms
        ],
        out_specs=pl.BlockSpec((tm, dp), lambda i, k: (i, 0)),
        scratch_shapes=[
            pltpu.VMEM((tm, 1), jnp.float32),    # running softmax denominator
            pltpu.VMEM((tm, dp), jnp.float32),   # un-normalized mix accumulator
            pltpu.VMEM((tm, dp), jnp.float32),   # hoisted normalized queries
        ],
        compiler_params=pltpu.CompilerParams(
            dimension_semantics=("parallel", "arbitrary"),
            vmem_limit_bytes=vmem_limit,
        ),
    )(x, x, inv_norm, inv_norm)

    if n_pad != n or dp != d:
        out = out[:n, :d]
    return out


def sft_reference(emb_org, sigma=0.1):
    norm = jnp.maximum(
        jnp.linalg.norm(emb_org, ord=2, axis=1, keepdims=True), 1e-12
    )
    xn = emb_org / norm
    w = (xn @ xn.T) / sigma
    t = jax.nn.softmax(w, axis=1)
    return t @ emb_org


if __name__ == "__main__":
    key = jax.random.PRNGKey(0)
    # SFT_torch has no learned parameters; only the sigma hyperparameter.
    # N=512, D=64 keeps it small but exercises a 2x2 tiled grid.
    N, D = 512, 64
    emb_org = jax.random.normal(key, (N, D), dtype=jnp.float32)

    out = jax.block_until_ready(sft_forward(emb_org, sigma=0.1))
    ref = sft_reference(emb_org, sigma=0.1)

    assert out.shape == (N, D)
    max_err = jnp.max(jnp.abs(out - ref))
    assert jnp.allclose(out, ref, atol=1e-4, rtol=1e-4), (
        f"max abs err {max_err}"
    )
    print("KERNEL_OK")
</pallas_src>

<mosaic_0001>
module attributes {stable_mosaic.version = 11 : i64} {
  func.func @_sft_kernel(%arg0: i32, %arg1: i32, %arg2: memref<256x128xf32, #tpu.memory_space<vmem>>, %arg3: memref<256x128xf32, #tpu.memory_space<vmem>>, %arg4: memref<256x1xf32, #tpu.memory_space<vmem>>, %arg5: memref<256x1xf32, #tpu.memory_space<vmem>>, %arg6: memref<256x128xf32, #tpu.memory_space<vmem>>, %arg7: memref<256x1xf32, #tpu.memory_space<vmem>>, %arg8: memref<256x128xf32, #tpu.memory_space<vmem>>, %arg9: memref<256x128xf32, #tpu.memory_space<vmem>>) attributes {dimension_semantics = [#tpu.dimension_semantics<parallel>, #tpu.dimension_semantics<arbitrary>], iteration_bounds = array<i64: 2, 2>, scalar_prefetch = 0 : i64, scratch_operands = 3 : i64, tpu.core_type = #tpu.core_type<tc>, window_params = [{transform_indices = @transform_0, window_bounds = array<i64: 256, 128>}, {transform_indices = @transform_1, window_bounds = array<i64: 256, 128>}, {transform_indices = @transform_2, window_bounds = array<i64: 256, 1>}, {transform_indices = @transform_3, window_bounds = array<i64: 256, 1>}, {transform_indices = @transform_4, window_bounds = array<i64: 256, 128>}]} {
    %c0_i32 = arith.constant 0 : i32
    %0 = arith.cmpi eq, %arg1, %c0_i32 : i32
    %1 = arith.extui %0 : i1 to i32
    %c0_i32_0 = arith.constant 0 : i32
    %2 = arith.cmpi ne, %1, %c0_i32_0 : i32
    scf.if %2 {
      %cst_18 = arith.constant 0.000000e+00 : f32
      %24 = vector.broadcast %cst_18 : f32 to vector<256x1xf32>
      %c0_19 = arith.constant 0 : index
      %c0_20 = arith.constant 0 : index
      %25 = vector.load %arg7[%c0_19, %c0_20] : memref<256x1xf32, #tpu.memory_space<vmem>>, vector<256x1xf32>
      tpu.vector_store %arg7[%c0_19, %c0_20], %24 {strides = array<i32>} : memref<256x1xf32, #tpu.memory_space<vmem>>, vector<256x1xf32>,
      %cst_21 = arith.constant 0.000000e+00 : f32
      %26 = vector.broadcast %cst_21 : f32 to vector<256x128xf32>
      %c0_22 = arith.constant 0 : index
      %c0_23 = arith.constant 0 : index
      %27 = vector.load %arg8[%c0_22, %c0_23] : memref<256x128xf32, #tpu.memory_space<vmem>>, vector<256x128xf32>
      tpu.vector_store %arg8[%c0_22, %c0_23], %26 {strides = array<i32>} : memref<256x128xf32, #tpu.memory_space<vmem>>, vector<256x128xf32>,
      %c0_24 = arith.constant 0 : index
      %c0_25 = arith.constant 0 : index
      %28 = vector.load %arg2[%c0_24, %c0_25] : memref<256x128xf32, #tpu.memory_space<vmem>>, vector<256x128xf32>
      %c0_26 = arith.constant 0 : index
      %c0_27 = arith.constant 0 : index
      %29 = vector.load %arg4[%c0_26, %c0_27] : memref<256x1xf32, #tpu.memory_space<vmem>>, vector<256x1xf32>
      %cst_28 = arith.constant 1.000000e+01 : f32
      %30 = vector.broadcast %cst_28 : f32 to vector<256x1xf32>
      %31 = arith.mulf %29, %30 : vector<256x1xf32>
      %32 = vector.broadcast %31 : vector<256x1xf32> to vector<256x128xf32>
      %33 = arith.mulf %28, %32 : vector<256x128xf32>
      %c0_29 = arith.constant 0 : index
      %c0_30 = arith.constant 0 : index
      %34 = vector.load %arg9[%c0_29, %c0_30] : memref<256x128xf32, #tpu.memory_space<vmem>>, vector<256x128xf32>
      tpu.vector_store %arg9[%c0_29, %c0_30], %33 {strides = array<i32>} : memref<256x128xf32, #tpu.memory_space<vmem>>, vector<256x128xf32>,
    } else {
    }
    %c0 = arith.constant 0 : index
    %c0_1 = arith.constant 0 : index
    %3 = vector.load %arg3[%c0, %c0_1] : memref<256x128xf32, #tpu.memory_space<vmem>>, vector<256x128xf32>
    %c0_2 = arith.constant 0 : index
    %c0_3 = arith.constant 0 : index
    %4 = vector.load %arg5[%c0_2, %c0_3] : memref<256x1xf32, #tpu.memory_space<vmem>>, vector<256x1xf32>
    %5 = vector.broadcast %4 : vector<256x1xf32> to vector<256x128xf32>
    %6 = arith.mulf %3, %5 : vector<256x128xf32>
    %c0_4 = arith.constant 0 : index
    %c0_5 = arith.constant 0 : index
    %7 = vector.load %arg9[%c0_4, %c0_5] : memref<256x128xf32, #tpu.memory_space<vmem>>, vector<256x128xf32>
    %cst = arith.constant dense<0.000000e+00> : vector<256x256xf32>
    %8 = tpu.matmul %7, %6, %cst {dimension_numbers = #tpu.dot_dimension_numbers<[1], [1], [0], [0], [0, 0, 1, 0], [], []>} : vector<256x128xf32>, vector<256x128xf32>, vector<256x256xf32> -> vector<256x256xf32>
    %cst_6 = arith.constant 1.000000e+01 : f32
    %9 = vector.broadcast %cst_6 : f32 to vector<256x256xf32>
    %10 = arith.subf %8, %9 : vector<256x256xf32>
    %11 = math.exp %10 : vector<256x256xf32>
    %c0_7 = arith.constant 0 : index
    %c0_8 = arith.constant 0 : index
    %12 = vector.load %arg7[%c0_7, %c0_8] : memref<256x1xf32, #tpu.memory_space<vmem>>, vector<256x1xf32>
    %cst_9 = arith.constant dense<0.000000e+00> : vector<256xf32>
    %13 = vector.multi_reduction <add>, %11, %cst_9 [1] : vector<256x256xf32> to vector<256xf32>
    %14 = vector.shape_cast %13 : vector<256xf32> to vector<256x1xf32>
    %15 = arith.addf %12, %14 : vector<256x1xf32>
    %c0_10 = arith.constant 0 : index
    %c0_11 = arith.constant 0 : index
    %16 = vector.load %arg7[%c0_10, %c0_11] : memref<256x1xf32, #tpu.memory_space<vmem>>, vector<256x1xf32>
    tpu.vector_store %arg7[%c0_10, %c0_11], %15 {strides = array<i32>} : memref<256x1xf32, #tpu.memory_space<vmem>>, vector<256x1xf32>,
    %c0_12 = arith.constant 0 : index
    %c0_13 = arith.constant 0 : index
    %17 = vector.load %arg8[%c0_12, %c0_13] : memref<256x128xf32, #tpu.memory_space<vmem>>, vector<256x128xf32>
    %cst_14 = arith.constant dense<0.000000e+00> : vector<256x128xf32>
    %18 = tpu.matmul %11, %3, %cst_14 {dimension_numbers = #tpu.dot_dimension_numbers<[1], [0], [0], [1], [0, 0, 1, 1], [], []>} : vector<256x256xf32>, vector<256x128xf32>, vector<256x128xf32> -> vector<256x128xf32>
    %19 = arith.addf %17, %18 : vector<256x128xf32>
    %c0_15 = arith.constant 0 : index
    %c0_16 = arith.constant 0 : index
    %20 = vector.load %arg8[%c0_15, %c0_16] : memref<256x128xf32, #tpu.memory_space<vmem>>, vector<256x128xf32>
    tpu.vector_store %arg8[%c0_15, %c0_16], %19 {strides = array<i32>} : memref<256x128xf32, #tpu.memory_space<vmem>>, vector<256x128xf32>,
    %c1_i32 = arith.constant 1 : i32
    %21 = arith.cmpi eq, %arg1, %c1_i32 : i32
    %22 = arith.extui %21 : i1 to i32
    %c0_i32_17 = arith.constant 0 : i32
    %23 = arith.cmpi ne, %22, %c0_i32_17 : i32
    scf.if %23 {
      %c0_18 = arith.constant 0 : index
      %c0_19 = arith.constant 0 : index
      %24 = vector.load %arg7[%c0_18, %c0_19] : memref<256x1xf32, #tpu.memory_space<vmem>>, vector<256x1xf32>
      %25 = tpu.reciprocal %24 : vector<256x1xf32> -> vector<256x1xf32>
      %c0_20 = arith.constant 0 : index
      %c0_21 = arith.constant 0 : index
      %26 = vector.load %arg8[%c0_20, %c0_21] : memref<256x128xf32, #tpu.memory_space<vmem>>, vector<256x128xf32>
      %27 = vector.broadcast %25 : vector<256x1xf32> to vector<256x128xf32>
      %28 = arith.mulf %26, %27 : vector<256x128xf32>
      %c0_22 = arith.constant 0 : index
      %c0_23 = arith.constant 0 : index
      %29 = vector.load %arg6[%c0_22, %c0_23] : memref<256x128xf32, #tpu.memory_space<vmem>>, vector<256x128xf32>
      tpu.vector_store %arg6[%c0_22, %c0_23], %28 {strides = array<i32>} : memref<256x128xf32, #tpu.memory_space<vmem>>, vector<256x128xf32>,
    } else {
    }
    return
  }
  func.func @transform_0(%arg0: i32, %arg1: i32) -> (i32, i32) {
    %c0_i32 = arith.constant 0 : i32
    %c0_i32_0 = arith.constant 0 : i32
    return %arg0, %c0_i32 : i32, i32
  }
  func.func @transform_1(%arg0: i32, %arg1: i32) -> (i32, i32) {
    %c0_i32 = arith.constant 0 : i32
    %c0_i32_0 = arith.constant 0 : i32
    return %arg1, %c0_i32 : i32, i32
  }
  func.func @transform_2(%arg0: i32, %arg1: i32) -> (i32, i32) {
    %c0_i32 = arith.constant 0 : i32
    %c0_i32_0 = arith.constant 0 : i32
    return %arg0, %c0_i32 : i32, i32
  }
  func.func @transform_3(%arg0: i32, %arg1: i32) -> (i32, i32) {
    %c0_i32 = arith.constant 0 : i32
    %c0_i32_0 = arith.constant 0 : i32
    return %arg1, %c0_i32 : i32, i32
  }
  func.func @transform_4(%arg0: i32, %arg1: i32) -> (i32, i32) {
    %c0_i32 = arith.constant 0 : i32
    %c0_i32_0 = arith.constant 0 : i32
    return %arg0, %c0_i32 : i32, i32
  }
}

</mosaic_0001>

<llo_original>
// kernel: tpu_custom_call.1
$region0: #{tpu_custom_call.1}
  #allocation0 [shape = 'u32[]', space=smem, size = 0x4, offset = 0x4, fixed_abs, tag = 'smem constant byte address 0x4 - core index']
  #allocation1 [shape = 'u32[144,128]{1,0:T(1,128)}', space=vmem, size = 0x12000, scoped, tag = 'internal scratch']
  #allocation2 [shape = 'f32[256,1]{1,0:T(8,128)}', space=vmem, size = 0x20000, scoped, tag = 'scratch operand']
  #allocation3 [shape = 'f32[256,128]{1,0:T(8,128)}', space=vmem, size = 0x20000, scoped, tag = 'scratch operand']
  #allocation4 [shape = 'f32[256,128]{1,0:T(8,128)}', space=vmem, size = 0x20000, scoped, tag = 'scratch operand']
  %s0 = inlined_call_operand.vmem [shape: f32[512,128], index: 0, kind: input, shape index: {}]
  %s1 = inlined_call_operand.vmem [shape: f32[512,128], index: 1, kind: input, shape index: {}]
  %s2 = inlined_call_operand.vmem [shape: f32[512,1], index: 2, kind: input, shape index: {}]
  %s3 = inlined_call_operand.vmem [shape: f32[512,1], index: 3, kind: input, shape index: {}]
  %s4 = inlined_call_operand.hbm [shape: f32[512,128], index: 4, kind: output, shape index: {}]
  %s5 = sld [smem:[#allocation0]]
  $region57: #{tpu_custom_call.1} parent=0
    _
  %s7 = ssub.s32 1, %s5
  %s8 = scalar_select 0, %s7, %s5
  $region1: #{tpu_custom_call.1} parent=0
    #allocation5 [shape = 'u8[262144]{0}', space=vmem, size = 0x40000, scoped, tag = 'output window, operand 0']
    #allocation6 [shape = 's32[2]{0}', space=sflag, size = 0x8, scoped, tag = 'scoped memory for tpu_custom_call.1']
    %9 = vsyncpa [#allocation6], 0
    %s10 = scalar_lea.sflag [#allocation6], 1
    %11 = vsyncpa %s10, 0
    loop: start=0, step=1, limit=6
    $region2: #{tpu_custom_call.1} parent=1 // loop_pre_header
      _
    $region3: #{tpu_custom_call.1} parent=1 // loop_header
      %s13 = sphi 0, %s17
      %p14 = scmp.ge.s32.totalorder %s13, 6
      %s20 = sphi 0, %s32
      %s21 = sphi 0, %s28
      %s22 = sphi 0, %s20
      %s23 = sphi 0, %s21
      %s24 = sphi 0, %s22
      %s25 = sphi 0, %s23
      %s35 = sphi 0, %s37
      %s38 = sphi 0, %s35
      %s39 = sphi 0, %s38
      %s55 = sphi 0, %s39
      %s61 = sphi 0, %s63
      %s64 = sphi 0, %s61
      %s65 = sphi 0, %s64
      %s81 = sphi 0, %s65
      %s87 = sphi 0, %s89
      %s90 = sphi 0, %s87
      %s91 = sphi 0, %s90
      %s107 = sphi 0, %s91
      %s113 = sphi 0, %s115
      %s116 = sphi 0, %s113
      %s117 = sphi 0, %s116
      %s133 = sphi 0, %s117
      %s139 = sphi 0, %s141
      %s142 = sphi 0, %s139
      %s143 = sphi 0, %s142
      %s159 = sphi 0, %s143
    $region4: #{tpu_custom_call.1} parent=1 // loop_header_branch
      %16 = sbr.rel (%p14) target = $region8
    $region5: #{tpu_custom_call.1} parent=1 // loop_body
      %s18 = ssub.s32 %s13, 1
      %s19 = ssub.s32 %s13, 2
      %s26 = sadd.s32 1, %s21
      %p27 = scmp.ge.s32.totalorder %s26, 2
      %s28 = scalar_select %p27, 0, %s26
      %s29 = sadd.s32 1, %s20
      %s30 = scalar_select %p27, %s29, %s20
      %p31 = scmp.ge.s32.totalorder %s30, 2
      %s32 = scalar_select %p31, 0, %s30
      %s33 = ssub.s32 %s20, %s32
      %p34 = scmp.eq.s32.totalorder %s33, 0
      %s36 = sadd.s32 %s35, 1
      %s37 = scalar_select %p34, %s35, %s36
      %p40 = pneg %p34
      %p41 = scmp.eq.s32.totalorder %s13, 3
      %p42 = por %p40, %p41
      %p43 = scmp.ne.s32.totalorder %s35, %s38
      %p44 = scmp.eq.s32.totalorder %s13, 0
      %p45 = por %p43, %p44
      %p46 = scmp.ne.s32.totalorder %s35, %s38
      %p47 = scmp.eq.s32.totalorder %s18, 3
      %p48 = por %p46, %p47
      %p49 = scmp.ne.s32.totalorder %s38, %s39
      %p50 = scmp.eq.s32.totalorder %s18, 0
      %p51 = por %p49, %p50
      %p52 = scmp.ne.s32.totalorder %s38, %s39
      %p53 = scmp.eq.s32.totalorder %s19, 3
      %p54 = por %p52, %p53
      %p56 = scmp.ne.s32.totalorder %s39, %s55
      %p57 = scmp.eq.s32.totalorder %s19, 0
      %p58 = por %p56, %p57
      %s59 = ssub.s32 %s21, %s28
      %p60 = scmp.eq.s32.totalorder %s59, 0
      %s62 = sadd.s32 %s61, 1
      %s63 = scalar_select %p60, %s61, %s62
      %p66 = pneg %p60
      %p67 = scmp.eq.s32.totalorder %s13, 3
      %p68 = por %p66, %p67
      %p69 = scmp.ne.s32.totalorder %s61, %s64
      %p70 = scmp.eq.s32.totalorder %s13, 0
      %p71 = por %p69, %p70
      %p72 = scmp.ne.s32.totalorder %s61, %s64
      %p73 = scmp.eq.s32.totalorder %s18, 3
      %p74 = por %p72, %p73
      %p75 = scmp.ne.s32.totalorder %s64, %s65
      %p76 = scmp.eq.s32.totalorder %s18, 0
      %p77 = por %p75, %p76
      %p78 = scmp.ne.s32.totalorder %s64, %s65
      %p79 = scmp.eq.s32.totalorder %s19, 3
      %p80 = por %p78, %p79
      %p82 = scmp.ne.s32.totalorder %s65, %s81
      %p83 = scmp.eq.s32.totalorder %s19, 0
      %p84 = por %p82, %p83
      %s85 = ssub.s32 %s20, %s32
      %p86 = scmp.eq.s32.totalorder %s85, 0
      %s88 = sadd.s32 %s87, 1
      %s89 = scalar_select %p86, %s87, %s88
      %p92 = pneg %p86
      %p93 = scmp.eq.s32.totalorder %s13, 3
      %p94 = por %p92, %p93
      %p95 = scmp.ne.s32.totalorder %s87, %s90
      %p96 = scmp.eq.s32.totalorder %s13, 0
      %p97 = por %p95, %p96
      %p98 = scmp.ne.s32.totalorder %s87, %s90
      %p99 = scmp.eq.s32.totalorder %s18, 3
      %p100 = por %p98, %p99
      %p101 = scmp.ne.s32.totalorder %s90, %s91
      %p102 = scmp.eq.s32.totalorder %s18, 0
      %p103 = por %p101, %p102
      %p104 = scmp.ne.s32.totalorder %s90, %s91
      %p105 = scmp.eq.s32.totalorder %s19, 3
      %p106 = por %p104, %p105
      %p108 = scmp.ne.s32.totalorder %s91, %s107
      %p109 = scmp.eq.s32.totalorder %s19, 0
      %p110 = por %p108, %p109
      %s111 = ssub.s32 %s21, %s28
      %p112 = scmp.eq.s32.totalorder %s111, 0
      %s114 = sadd.s32 %s113, 1
      %s115 = scalar_select %p112, %s113, %s114
      %p118 = pneg %p112
      %p119 = scmp.eq.s32.totalorder %s13, 3
      %p120 = por %p118, %p119
      %p121 = scmp.ne.s32.totalorder %s113, %s116
      %p122 = scmp.eq.s32.totalorder %s13, 0
      %p123 = por %p121, %p122
      %p124 = scmp.ne.s32.totalorder %s113, %s116
      %p125 = scmp.eq.s32.totalorder %s18, 3
      %p126 = por %p124, %p125
      %p127 = scmp.ne.s32.totalorder %s116, %s117
      %p128 = scmp.eq.s32.totalorder %s18, 0
      %p129 = por %p127, %p128
      %p130 = scmp.ne.s32.totalorder %s116, %s117
      %p131 = scmp.eq.s32.totalorder %s19, 3
      %p132 = por %p130, %p131
      %p134 = scmp.ne.s32.totalorder %s117, %s133
      %p135 = scmp.eq.s32.totalorder %s19, 0
      %p136 = por %p134, %p135
      %s137 = ssub.s32 %s20, %s32
      %p138 = scmp.eq.s32.totalorder %s137, 0
      %s140 = sadd.s32 %s139, 1
      %s141 = scalar_select %p138, %s139, %s140
      %p144 = pneg %p138
      %p145 = scmp.eq.s32.totalorder %s13, 3
      %p146 = por %p144, %p145
      %p147 = scmp.ne.s32.totalorder %s139, %s142
      %p148 = scmp.eq.s32.totalorder %s13, 0
      %p149 = por %p147, %p148
      %p150 = scmp.ne.s32.totalorder %s139, %s142
      %p151 = scmp.eq.s32.totalorder %s18, 3
      %p152 = por %p150, %p151
      %p153 = scmp.ne.s32.totalorder %s142, %s143
      %p154 = scmp.eq.s32.totalorder %s18, 0
      %p155 = por %p153, %p154
      %p156 = scmp.ne.s32.totalorder %s142, %s143
      %p157 = scmp.eq.s32.totalorder %s19, 3
      %p158 = por %p156, %p157
      %p160 = scmp.ne.s32.totalorder %s143, %s159
      %p161 = scmp.eq.s32.totalorder %s19, 0
      %p162 = por %p160, %p161
      %p163 = scmp.le.s32.totalorder 1, %s13
      %p164 = scmp.lt.s32.totalorder %s13, 5
      %p165 = pnand %p163, %p164
      %p166 = pneg %p165
      // Predicated region
      $region9: #{tpu_custom_call.1} parent=5 // pred_check
        _
      $region10: #{tpu_custom_call.1} parent=5 // pred_check_branch
        %168 = sbr.rel (%p165) target = $region12
      $region11: #{tpu_custom_call.1} parent=5 // pred_region
        %s169 = ssub.s32 %s13, 1
      $region12: #{tpu_custom_call.1} parent=5 // pred_fallthru
        _
      %p170 = scmp.lt.s32.totalorder %s13, 4
      // Predicated region
      $region13: #{tpu_custom_call.1} parent=5 // pred_check
        %p171 = pneg %p170
      $region14: #{tpu_custom_call.1} parent=5 // pred_check_branch
        %173 = sbr.rel (%p171) target = $region16
      $region15: #{tpu_custom_call.1} parent=5 // pred_region
        // Predicated region
        $region17: #{tpu_custom_call.1} parent=15 // pred_check
          %p174 = pneg %p45
        $region18: #{tpu_custom_call.1} parent=15 // pred_check_branch
          %176 = sbr.rel (%p174) target = $region20
        $region19: #{tpu_custom_call.1} parent=15 // pred_region
          %s177 = smul.u32 32, %s20
          %p178 = scmp.lt.s32.totalorder %s177, 63
          %s179 = scalar_select %p178, %s177, 63
          %s180 = smul.addr %s179, 8
          %s181 = scalar_lea.vmem %s0, %s180
          %s182 = smul.u32 32, %s20
        $region20: #{tpu_custom_call.1} parent=15 // pred_fallthru
          _
        // Predicated region
        $region21: #{tpu_custom_call.1} parent=15 // pred_check
          %p183 = pneg %p71
        $region22: #{tpu_custom_call.1} parent=15 // pred_check_branch
          %185 = sbr.rel (%p183) target = $region24
        $region23: #{tpu_custom_call.1} parent=15 // pred_region
          %s186 = smul.u32 32, %s21
          %p187 = scmp.lt.s32.totalorder %s186, 63
          %s188 = scalar_select %p187, %s186, 63
          %s189 = smul.addr %s188, 8
          %s190 = scalar_lea.vmem %s1, %s189
          %s191 = smul.u32 32, %s21
        $region24: #{tpu_custom_call.1} parent=15 // pred_fallthru
          _
        // Predicated region
        $region25: #{tpu_custom_call.1} parent=15 // pred_check
          %p192 = pneg %p97
        $region26: #{tpu_custom_call.1} parent=15 // pred_check_branch
          %194 = sbr.rel (%p192) target = $region28
        $region27: #{tpu_custom_call.1} parent=15 // pred_region
          %s195 = smul.u32 32, %s20
          %p196 = scmp.lt.s32.totalorder %s195, 63
          %s197 = scalar_select %p196, %s195, 63
          %s198 = smul.addr %s197, 8
          %s199 = scalar_lea.vmem %s2, %s198
          %s200 = smul.u32 32, %s20
        $region28: #{tpu_custom_call.1} parent=15 // pred_fallthru
          _
        // Predicated region
        $region29: #{tpu_custom_call.1} parent=15 // pred_check
          %p201 = pneg %p123
        $region30: #{tpu_custom_call.1} parent=15 // pred_check_branch
          %203 = sbr.rel (%p201) target = $region32
        $region31: #{tpu_custom_call.1} parent=15 // pred_region
          %s204 = smul.u32 32, %s21
          %p205 = scmp.lt.s32.totalorder %s204, 63
          %s206 = scalar_select %p205, %s204, 63
          %s207 = smul.addr %s206, 8
          %s208 = scalar_lea.vmem %s3, %s207
          %s209 = smul.u32 32, %s21
        $region32: #{tpu_custom_call.1} parent=15 // pred_fallthru
          _
      $region16: #{tpu_custom_call.1} parent=5 // pred_fallthru
        _
      %p210 = scmp.le.s32.totalorder 1, %s13
      %p211 = scmp.lt.s32.totalorder %s13, 5
      %p212 = pnand %p210, %p211
      %p213 = pneg %p212
      // Predicated region
      $region33: #{tpu_custom_call.1} parent=5 // pred_check
        _
      $region34: #{tpu_custom_call.1} parent=5 // pred_check_branch
        %215 = sbr.rel (%p212) target = $region36
      $region35: #{tpu_custom_call.1} parent=5 // pred_region
        %s216 = ssub.s32 %s13, 1
        %s217 = smul.u32 32, %s22
        %p218 = scmp.lt.s32.totalorder %s217, 63
        %s219 = scalar_select %p218, %s217, 63
        %s220 = smul.addr %s219, 8
        %s221 = scalar_lea.vmem %s0, %s220
        %p222 = pneg %p51
        %p223 = pneg %p48
        %s224 = smul.u32 32, %s23
        %p225 = scmp.lt.s32.totalorder %s224, 63
        %s226 = scalar_select %p225, %s224, 63
        %s227 = smul.addr %s226, 8
        %s228 = scalar_lea.vmem %s1, %s227
        %p229 = pneg %p77
        %p230 = pneg %p74
        %s231 = smul.u32 32, %s22
        %p232 = scmp.lt.s32.totalorder %s231, 63
        %s233 = scalar_select %p232, %s231, 63
        %s234 = smul.addr %s233, 8
        %s235 = scalar_lea.vmem %s2, %s234
        %p236 = pneg %p103
        %p237 = pneg %p100
        %s238 = smul.u32 32, %s23
        %p239 = scmp.lt.s32.totalorder %s238, 63
        %s240 = scalar_select %p239, %s238, 63
        %s241 = smul.addr %s240, 8
        %s242 = scalar_lea.vmem %s3, %s241
        %p243 = pneg %p129
        %p244 = pneg %p126
        %p245 = pneg %p155
        %p246 = pneg %p152
        %s247 = sand.u32 %s142, 1
        %s248 = scalar_lea.sflag [#allocation6], %s247
        %s249 = sand.u32 %s142, 1
        %s250 = smul.addr %s249, 256
        %s251 = scalar_lea.vmem [#allocation5], %s250
        %s252 = smul.u32 32, %s22
        %p253 = scmp.lt.s32.totalorder %s252, 63
        %s254 = scalar_select %p253, %s252, 63
        %s255 = smul.addr %s254, 8
        %s256 = scalar_lea.vmem %s0, %s255
        %s257 = smul.u32 32, %s22
        %s258 = smul.u32 32, %s23
        %p259 = scmp.lt.s32.totalorder %s258, 63
        %s260 = scalar_select %p259, %s258, 63
        %s261 = smul.addr %s260, 8
        %s262 = scalar_lea.vmem %s1, %s261
        %s263 = smul.u32 32, %s23
        %s264 = smul.u32 32, %s22
        %p265 = scmp.lt.s32.totalorder %s264, 63
        %s266 = scalar_select %p265, %s264, 63
        %s267 = smul.addr %s266, 8
        %s268 = scalar_lea.vmem %s2, %s267
        %s269 = smul.u32 32, %s22
        %s270 = smul.u32 32, %s23
        %p271 = scmp.lt.s32.totalorder %s270, 63
        %s272 = scalar_select %p271, %s270, 63
        %s273 = smul.addr %s272, 8
        %s274 = scalar_lea.vmem %s3, %s273
        %s275 = smul.u32 32, %s23
        %s276 = smul.u32 32, %s22
        %p277 = scmp.eq.s32.totalorder %s23, 0
        // Predicated region
        $region37: #{tpu_custom_call.1} parent=35 // pred_check
          %p278 = pneg %p277
        $region38: #{tpu_custom_call.1} parent=35 // pred_check_branch
          %280 = sbr.rel (%p278) target = $region40
        $region39: #{tpu_custom_call.1} parent=35 // pred_region
          %vm281 = vcmask 7168
          %282 = vst.msk [vmem:[#allocation2] sm:$0xff] %vm281, 0.0
          %283 = vst.msk [vmem:[#allocation2 + $0x8] sm:$0xff] %vm281, 0.0
          %284 = vst.msk [vmem:[#allocation2 + $0x10] sm:$0xff] %vm281, 0.0
          %285 = vst.msk [vmem:[#allocation2 + $0x18] sm:$0xff] %vm281, 0.0
          %286 = vst.msk [vmem:[#allocation2 + $0x20] sm:$0xff] %vm281, 0.0
          %287 = vst.msk [vmem:[#allocation2 + $0x28] sm:$0xff] %vm281, 0.0
          %288 = vst.msk [vmem:[#allocation2 + $0x30] sm:$0xff] %vm281, 0.0
          %289 = vst.msk [vmem:[#allocation2 + $0x38] sm:$0xff] %vm281, 0.0
          %290 = vst.msk [vmem:[#allocation2 + $0x40] sm:$0xff] %vm281, 0.0
          %291 = vst.msk [vmem:[#allocation2 + $0x48] sm:$0xff] %vm281, 0.0
          %292 = vst.msk [vmem:[#allocation2 + $0x50] sm:$0xff] %vm281, 0.0
          %293 = vst.msk [vmem:[#allocation2 + $0x58] sm:$0xff] %vm281, 0.0
          %294 = vst.msk [vmem:[#allocation2 + $0x60] sm:$0xff] %vm281, 0.0
          %295 = vst.msk [vmem:[#allocation2 + $0x68] sm:$0xff] %vm281, 0.0
          %296 = vst.msk [vmem:[#allocation2 + $0x70] sm:$0xff] %vm281, 0.0
          %297 = vst.msk [vmem:[#allocation2 + $0x78] sm:$0xff] %vm281, 0.0
          %298 = vst.msk [vmem:[#allocation2 + $0x80] sm:$0xff] %vm281, 0.0
          %299 = vst.msk [vmem:[#allocation2 + $0x88] sm:$0xff] %vm281, 0.0
          %300 = vst.msk [vmem:[#allocation2 + $0x90] sm:$0xff] %vm281, 0.0
          %301 = vst.msk [vmem:[#allocation2 + $0x98] sm:$0xff] %vm281, 0.0
          %302 = vst.msk [vmem:[#allocation2 + $0xa0] sm:$0xff] %vm281, 0.0
          %303 = vst.msk [vmem:[#allocation2 + $0xa8] sm:$0xff] %vm281, 0.0
          %304 = vst.msk [vmem:[#allocation2 + $0xb0] sm:$0xff] %vm281, 0.0
          %305 = vst.msk [vmem:[#allocation2 + $0xb8] sm:$0xff] %vm281, 0.0
          %306 = vst.msk [vmem:[#allocation2 + $0xc0] sm:$0xff] %vm281, 0.0
          %307 = vst.msk [vmem:[#allocation2 + $0xc8] sm:$0xff] %vm281, 0.0
          %308 = vst.msk [vmem:[#allocation2 + $0xd0] sm:$0xff] %vm281, 0.0
          %309 = vst.msk [vmem:[#allocation2 + $0xd8] sm:$0xff] %vm281, 0.0
          %310 = vst.msk [vmem:[#allocation2 + $0xe0] sm:$0xff] %vm281, 0.0
          %311 = vst.msk [vmem:[#allocation2 + $0xe8] sm:$0xff] %vm281, 0.0
          %312 = vst.msk [vmem:[#allocation2 + $0xf0] sm:$0xff] %vm281, 0.0
          %313 = vst.msk [vmem:[#allocation2 + $0xf8] sm:$0xff] %vm281, 0.0
          %314 = vst [vmem:[#allocation3] sm:$0xff] 0.0
          %315 = vst [vmem:[#allocation3 + $0x8] sm:$0xff] 0.0
          %316 = vst [vmem:[#allocation3 + $0x10] sm:$0xff] 0.0
          %317 = vst [vmem:[#allocation3 + $0x18] sm:$0xff] 0.0
          %318 = vst [vmem:[#allocation3 + $0x20] sm:$0xff] 0.0
          %319 = vst [vmem:[#allocation3 + $0x28] sm:$0xff] 0.0
          %320 = vst [vmem:[#allocation3 + $0x30] sm:$0xff] 0.0
          %321 = vst [vmem:[#allocation3 + $0x38] sm:$0xff] 0.0
          %322 = vst [vmem:[#allocation3 + $0x40] sm:$0xff] 0.0
          %323 = vst [vmem:[#allocation3 + $0x48] sm:$0xff] 0.0
          %324 = vst [vmem:[#allocation3 + $0x50] sm:$0xff] 0.0
          %325 = vst [vmem:[#allocation3 + $0x58] sm:$0xff] 0.0
          %326 = vst [vmem:[#allocation3 + $0x60] sm:$0xff] 0.0
          %327 = vst [vmem:[#allocation3 + $0x68] sm:$0xff] 0.0
          %328 = vst [vmem:[#allocation3 + $0x70] sm:$0xff] 0.0
          %329 = vst [vmem:[#allocation3 + $0x78] sm:$0xff] 0.0
          %330 = vst [vmem:[#allocation3 + $0x80] sm:$0xff] 0.0
          %331 = vst [vmem:[#allocation3 + $0x88] sm:$0xff] 0.0
          %332 = vst [vmem:[#allocation3 + $0x90] sm:$0xff] 0.0
          %333 = vst [vmem:[#allocation3 + $0x98] sm:$0xff] 0.0
          %334 = vst [vmem:[#allocation3 + $0xa0] sm:$0xff] 0.0
          %335 = vst [vmem:[#allocation3 + $0xa8] sm:$0xff] 0.0
          %336 = vst [vmem:[#allocation3 + $0xb0] sm:$0xff] 0.0
          %337 = vst [vmem:[#allocation3 + $0xb8] sm:$0xff] 0.0
          %338 = vst [vmem:[#allocation3 + $0xc0] sm:$0xff] 0.0
          %339 = vst [vmem:[#allocation3 + $0xc8] sm:$0xff] 0.0
          %340 = vst [vmem:[#allocation3 + $0xd0] sm:$0xff] 0.0
          %341 = vst [vmem:[#allocation3 + $0xd8] sm:$0xff] 0.0
          %342 = vst [vmem:[#allocation3 + $0xe0] sm:$0xff] 0.0
          %343 = vst [vmem:[#allocation3 + $0xe8] sm:$0xff] 0.0
          %344 = vst [vmem:[#allocation3 + $0xf0] sm:$0xff] 0.0
          %345 = vst [vmem:[#allocation3 + $0xf8] sm:$0xff] 0.0
          %v346 = vld [vmem:[%s256] sm:$0xff]
          %v347 = vld [vmem:[%s256 + $0x8] sm:$0xff]
          %v348 = vld [vmem:[%s256 + $0x10] sm:$0xff]
          %v349 = vld [vmem:[%s256 + $0x18] sm:$0xff]
          %v350 = vld [vmem:[%s256 + $0x20] sm:$0xff]
          %v351 = vld [vmem:[%s256 + $0x28] sm:$0xff]
          %v352 = vld [vmem:[%s256 + $0x30] sm:$0xff]
          %v353 = vld [vmem:[%s256 + $0x38] sm:$0xff]
          %v354 = vld [vmem:[%s256 + $0x40] sm:$0xff]
          %v355 = vld [vmem:[%s256 + $0x48] sm:$0xff]
          %v356 = vld [vmem:[%s256 + $0x50] sm:$0xff]
          %v357 = vld [vmem:[%s256 + $0x58] sm:$0xff]
          %v358 = vld [vmem:[%s256 + $0x60] sm:$0xff]
          %v359 = vld [vmem:[%s256 + $0x68] sm:$0xff]
          %v360 = vld [vmem:[%s256 + $0x70] sm:$0xff]
          %v361 = vld [vmem:[%s256 + $0x78] sm:$0xff]
          %v362 = vld [vmem:[%s256 + $0x80] sm:$0xff]
          %v363 = vld [vmem:[%s256 + $0x88] sm:$0xff]
          %v364 = vld [vmem:[%s256 + $0x90] sm:$0xff]
          %v365 = vld [vmem:[%s256 + $0x98] sm:$0xff]
          %v366 = vld [vmem:[%s256 + $0xa0] sm:$0xff]
          %v367 = vld [vmem:[%s256 + $0xa8] sm:$0xff]
          %v368 = vld [vmem:[%s256 + $0xb0] sm:$0xff]
          %v369 = vld [vmem:[%s256 + $0xb8] sm:$0xff]
          %v370 = vld [vmem:[%s256 + $0xc0] sm:$0xff]
          %v371 = vld [vmem:[%s256 + $0xc8] sm:$0xff]
          %v372 = vld [vmem:[%s256 + $0xd0] sm:$0xff]
          %v373 = vld [vmem:[%s256 + $0xd8] sm:$0xff]
          %v374 = vld [vmem:[%s256 + $0xe0] sm:$0xff]
          %v375 = vld [vmem:[%s256 + $0xe8] sm:$0xff]
          %v376 = vld [vmem:[%s256 + $0xf0] sm:$0xff]
          %v377 = vld [vmem:[%s256 + $0xf8] sm:$0xff]
          %v378 = vld [vmem:[%s268] sm:$0xff]
          %v379 = vld [vmem:[%s268 + $0x8] sm:$0xff]
          %v380 = vld [vmem:[%s268 + $0x10] sm:$0xff]
          %v381 = vld [vmem:[%s268 + $0x18] sm:$0xff]
          %v382 = vld [vmem:[%s268 + $0x20] sm:$0xff]
          %v383 = vld [vmem:[%s268 + $0x28] sm:$0xff]
          %v384 = vld [vmem:[%s268 + $0x30] sm:$0xff]
          %v385 = vld [vmem:[%s268 + $0x38] sm:$0xff]
          %v386 = vld [vmem:[%s268 + $0x40] sm:$0xff]
          %v387 = vld [vmem:[%s268 + $0x48] sm:$0xff]
          %v388 = vld [vmem:[%s268 + $0x50] sm:$0xff]
          %v389 = vld [vmem:[%s268 + $0x58] sm:$0xff]
          %v390 = vld [vmem:[%s268 + $0x60] sm:$0xff]
          %v391 = vld [vmem:[%s268 + $0x68] sm:$0xff]
          %v392 = vld [vmem:[%s268 + $0x70] sm:$0xff]
          %v393 = vld [vmem:[%s268 + $0x78] sm:$0xff]
          %v394 = vld [vmem:[%s268 + $0x80] sm:$0xff]
          %v395 = vld [vmem:[%s268 + $0x88] sm:$0xff]
          %v396 = vld [vmem:[%s268 + $0x90] sm:$0xff]
          %v397 = vld [vmem:[%s268 + $0x98] sm:$0xff]
          %v398 = vld [vmem:[%s268 + $0xa0] sm:$0xff]
          %v399 = vld [vmem:[%s268 + $0xa8] sm:$0xff]
          %v400 = vld [vmem:[%s268 + $0xb0] sm:$0xff]
          %v401 = vld [vmem:[%s268 + $0xb8] sm:$0xff]
          %v402 = vld [vmem:[%s268 + $0xc0] sm:$0xff]
          %v403 = vld [vmem:[%s268 + $0xc8] sm:$0xff]
          %v404 = vld [vmem:[%s268 + $0xd0] sm:$0xff]
          %v405 = vld [vmem:[%s268 + $0xd8] sm:$0xff]
          %v406 = vld [vmem:[%s268 + $0xe0] sm:$0xff]
          %v407 = vld [vmem:[%s268 + $0xe8] sm:$0xff]
          %v408 = vld [vmem:[%s268 + $0xf0] sm:$0xff]
          %v409 = vld [vmem:[%s268 + $0xf8] sm:$0xff]
          %v410 = vmul.f32 %v378, 10.0
          %v411 = vmul.f32 %v379, 10.0
          %v412 = vmul.f32 %v380, 10.0
          %v413 = vmul.f32 %v381, 10.0
          %v414 = vmul.f32 %v382, 10.0
          %v415 = vmul.f32 %v383, 10.0
          %v416 = vmul.f32 %v384, 10.0
          %v417 = vmul.f32 %v385, 10.0
          %v418 = vmul.f32 %v386, 10.0
          %v419 = vmul.f32 %v387, 10.0
          %v420 = vmul.f32 %v388, 10.0
          %v421 = vmul.f32 %v389, 10.0
          %v422 = vmul.f32 %v390, 10.0
          %v423 = vmul.f32 %v391, 10.0
          %v424 = vmul.f32 %v392, 10.0
          %v425 = vmul.f32 %v393, 10.0
          %v426 = vmul.f32 %v394, 10.0
          %v427 = vmul.f32 %v395, 10.0
          %v428 = vmul.f32 %v396, 10.0
          %v429 = vmul.f32 %v397, 10.0
          %v430 = vmul.f32 %v398, 10.0
          %v431 = vmul.f32 %v399, 10.0
          %v432 = vmul.f32 %v400, 10.0
          %v433 = vmul.f32 %v401, 10.0
          %v434 = vmul.f32 %v402, 10.0
          %v435 = vmul.f32 %v403, 10.0
          %v436 = vmul.f32 %v404, 10.0
          %v437 = vmul.f32 %v405, 10.0
          %v438 = vmul.f32 %v406, 10.0
          %v439 = vmul.f32 %v407, 10.0
          %v440 = vmul.f32 %v408, 10.0
          %v441 = vmul.f32 %v409, 10.0
          %443 = vset.pattern.permute.xlu0 0
          %444 = vperm.xlu0 %443, %v410
          %v445 = vpop.permute.xlu0 %444
          %448 = vset.pattern.permute.xlu0 0
          %449 = vperm.xlu0 %448, %v411
          %v450 = vpop.permute.xlu0 %449
          %453 = vset.pattern.permute.xlu0 0
          %454 = vperm.xlu0 %453, %v412
          %v455 = vpop.permute.xlu0 %454
          %458 = vset.pattern.permute.xlu0 0
          %459 = vperm.xlu0 %458, %v413
          %v460 = vpop.permute.xlu0 %459
          %463 = vset.pattern.permute.xlu0 0
          %464 = vperm.xlu0 %463, %v414
          %v465 = vpop.permute.xlu0 %464
          %468 = vset.pattern.permute.xlu0 0
          %469 = vperm.xlu0 %468, %v415
          %v470 = vpop.permute.xlu0 %469
          %473 = vset.pattern.permute.xlu0 0
          %474 = vperm.xlu0 %473, %v416
          %v475 = vpop.permute.xlu0 %474
          %478 = vset.pattern.permute.xlu0 0
          %479 = vperm.xlu0 %478, %v417
          %v480 = vpop.permute.xlu0 %479
          %483 = vset.pattern.permute.xlu0 0
          %484 = vperm.xlu0 %483, %v418
          %v485 = vpop.permute.xlu0 %484
          %488 = vset.pattern.permute.xlu0 0
          %489 = vperm.xlu0 %488, %v419
          %v490 = vpop.permute.xlu0 %489
          %493 = vset.pattern.permute.xlu0 0
          %494 = vperm.xlu0 %493, %v420
          %v495 = vpop.permute.xlu0 %494
          %498 = vset.pattern.permute.xlu0 0
          %499 = vperm.xlu0 %498, %v421
          %v500 = vpop.permute.xlu0 %499
          %503 = vset.pattern.permute.xlu0 0
          %504 = vperm.xlu0 %503, %v422
          %v505 = vpop.permute.xlu0 %504
          %508 = vset.pattern.permute.xlu0 0
          %509 = vperm.xlu0 %508, %v423
          %v510 = vpop.permute.xlu0 %509
          %513 = vset.pattern.permute.xlu0 0
          %514 = vperm.xlu0 %513, %v424
          %v515 = vpop.permute.xlu0 %514
          %518 = vset.pattern.permute.xlu0 0
          %519 = vperm.xlu0 %518, %v425
          %v520 = vpop.permute.xlu0 %519
          %523 = vset.pattern.permute.xlu0 0
          %524 = vperm.xlu0 %523, %v426
          %v525 = vpop.permute.xlu0 %524
          %528 = vset.pattern.permute.xlu0 0
          %529 = vperm.xlu0 %528, %v427
          %v530 = vpop.permute.xlu0 %529
          %533 = vset.pattern.permute.xlu0 0
          %534 = vperm.xlu0 %533, %v428
          %v535 = vpop.permute.xlu0 %534
          %538 = vset.pattern.permute.xlu0 0
          %539 = vperm.xlu0 %538, %v429
          %v540 = vpop.permute.xlu0 %539
          %543 = vset.pattern.permute.xlu0 0
          %544 = vperm.xlu0 %543, %v430
          %v545 = vpop.permute.xlu0 %544
          %548 = vset.pattern.permute.xlu0 0
          %549 = vperm.xlu0 %548, %v431
          %v550 = vpop.permute.xlu0 %549
          %553 = vset.pattern.permute.xlu0 0
          %554 = vperm.xlu0 %553, %v432
          %v555 = vpop.permute.xlu0 %554
          %558 = vset.pattern.permute.xlu0 0
          %559 = vperm.xlu0 %558, %v433
          %v560 = vpop.permute.xlu0 %559
          %563 = vset.pattern.permute.xlu0 0
          %564 = vperm.xlu0 %563, %v434
          %v565 = vpop.permute.xlu0 %564
          %568 = vset.pattern.permute.xlu0 0
          %569 = vperm.xlu0 %568, %v435
          %v570 = vpop.permute.xlu0 %569
          %573 = vset.pattern.permute.xlu0 0
          %574 = vperm.xlu0 %573, %v436
          %v575 = vpop.permute.xlu0 %574
          %578 = vset.pattern.permute.xlu0 0
          %579 = vperm.xlu0 %578, %v437
          %v580 = vpop.permute.xlu0 %579
          %583 = vset.pattern.permute.xlu0 0
          %584 = vperm.xlu0 %583, %v438
          %v585 = vpop.permute.xlu0 %584
          %588 = vset.pattern.permute.xlu0 0
          %589 = vperm.xlu0 %588, %v439
          %v590 = vpop.permute.xlu0 %589
          %593 = vset.pattern.permute.xlu0 0
          %594 = vperm.xlu0 %593, %v440
          %v595 = vpop.permute.xlu0 %594
          %598 = vset.pattern.permute.xlu0 0
          %599 = vperm.xlu0 %598, %v441
          %v600 = vpop.permute.xlu0 %599
          %v602 = vmul.f32 %v346, %v445
          %v603 = vmul.f32 %v347, %v450
          %v604 = vmul.f32 %v348, %v455
          %v605 = vmul.f32 %v349, %v460
          %v606 = vmul.f32 %v350, %v465
          %v607 = vmul.f32 %v351, %v470
          %v608 = vmul.f32 %v352, %v475
          %v609 = vmul.f32 %v353, %v480
          %v610 = vmul.f32 %v354, %v485
          %v611 = vmul.f32 %v355, %v490
          %v612 = vmul.f32 %v356, %v495
          %v613 = vmul.f32 %v357, %v500
          %v614 = vmul.f32 %v358, %v505
          %v615 = vmul.f32 %v359, %v510
          %v616 = vmul.f32 %v360, %v515
          %v617 = vmul.f32 %v361, %v520
          %v618 = vmul.f32 %v362, %v525
          %v619 = vmul.f32 %v363, %v530
          %v620 = vmul.f32 %v364, %v535
          %v621 = vmul.f32 %v365, %v540
          %v622 = vmul.f32 %v366, %v545
          %v623 = vmul.f32 %v367, %v550
          %v624 = vmul.f32 %v368, %v555
          %v625 = vmul.f32 %v369, %v560
          %v626 = vmul.f32 %v370, %v565
          %v627 = vmul.f32 %v371, %v570
          %v628 = vmul.f32 %v372, %v575
          %v629 = vmul.f32 %v373, %v580
          %v630 = vmul.f32 %v374, %v585
          %v631 = vmul.f32 %v375, %v590
          %v632 = vmul.f32 %v376, %v595
          %v633 = vmul.f32 %v377, %v600
          %634 = vst [vmem:[#allocation4] sm:$0xff] %v602
          %635 = vst [vmem:[#allocation4 + $0x8] sm:$0xff] %v603
          %636 = vst [vmem:[#allocation4 + $0x10] sm:$0xff] %v604
          %637 = vst [vmem:[#allocation4 + $0x18] sm:$0xff] %v605
          %638 = vst [vmem:[#allocation4 + $0x20] sm:$0xff] %v606
          %639 = vst [vmem:[#allocation4 + $0x28] sm:$0xff] %v607
          %640 = vst [vmem:[#allocation4 + $0x30] sm:$0xff] %v608
          %641 = vst [vmem:[#allocation4 + $0x38] sm:$0xff] %v609
          %642 = vst [vmem:[#allocation4 + $0x40] sm:$0xff] %v610
          %643 = vst [vmem:[#allocation4 + $0x48] sm:$0xff] %v611
          %644 = vst [vmem:[#allocation4 + $0x50] sm:$0xff] %v612
          %645 = vst [vmem:[#allocation4 + $0x58] sm:$0xff] %v613
          %646 = vst [vmem:[#allocation4 + $0x60] sm:$0xff] %v614
          %647 = vst [vmem:[#allocation4 + $0x68] sm:$0xff] %v615
          %648 = vst [vmem:[#allocation4 + $0x70] sm:$0xff] %v616
          %649 = vst [vmem:[#allocation4 + $0x78] sm:$0xff] %v617
          %650 = vst [vmem:[#allocation4 + $0x80] sm:$0xff] %v618
          %651 = vst [vmem:[#allocation4 + $0x88] sm:$0xff] %v619
          %652 = vst [vmem:[#allocation4 + $0x90] sm:$0xff] %v620
          %653 = vst [vmem:[#allocation4 + $0x98] sm:$0xff] %v621
          %654 = vst [vmem:[#allocation4 + $0xa0] sm:$0xff] %v622
          %655 = vst [vmem:[#allocation4 + $0xa8] sm:$0xff] %v623
          %656 = vst [vmem:[#allocation4 + $0xb0] sm:$0xff] %v624
          %657 = vst [vmem:[#allocation4 + $0xb8] sm:$0xff] %v625
          %658 = vst [vmem:[#allocation4 + $0xc0] sm:$0xff] %v626
          %659 = vst [vmem:[#allocation4 + $0xc8] sm:$0xff] %v627
          %660 = vst [vmem:[#allocation4 + $0xd0] sm:$0xff] %v628
          %661 = vst [vmem:[#allocation4 + $0xd8] sm:$0xff] %v629
          %662 = vst [vmem:[#allocation4 + $0xe0] sm:$0xff] %v630
          %663 = vst [vmem:[#allocation4 + $0xe8] sm:$0xff] %v631
          %664 = vst [vmem:[#allocation4 + $0xf0] sm:$0xff] %v632
          %665 = vst [vmem:[#allocation4 + $0xf8] sm:$0xff] %v633
        $region40: #{tpu_custom_call.1} parent=35 // pred_fallthru
          _
        %v666 = vld [vmem:[%s262] sm:$0xff]
        %v667 = vld [vmem:[%s262 + $0x8] sm:$0xff]
        %v668 = vld [vmem:[%s262 + $0x10] sm:$0xff]
        %v669 = vld [vmem:[%s262 + $0x18] sm:$0xff]
        %v670 = vld [vmem:[%s262 + $0x20] sm:$0xff]
        %v671 = vld [vmem:[%s262 + $0x28] sm:$0xff]
        %v672 = vld [vmem:[%s262 + $0x30] sm:$0xff]
        %v673 = vld [vmem:[%s262 + $0x38] sm:$0xff]
        %v674 = vld [vmem:[%s262 + $0x40] sm:$0xff]
        %v675 = vld [vmem:[%s262 + $0x48] sm:$0xff]
        %v676 = vld [vmem:[%s262 + $0x50] sm:$0xff]
        %v677 = vld [vmem:[%s262 + $0x58] sm:$0xff]
        %v678 = vld [vmem:[%s262 + $0x60] sm:$0xff]
        %v679 = vld [vmem:[%s262 + $0x68] sm:$0xff]
        %v680 = vld [vmem:[%s262 + $0x70] sm:$0xff]
        %v681 = vld [vmem:[%s262 + $0x78] sm:$0xff]
        %v682 = vld [vmem:[%s262 + $0x80] sm:$0xff]
        %v683 = vld [vmem:[%s262 + $0x88] sm:$0xff]
        %v684 = vld [vmem:[%s262 + $0x90] sm:$0xff]
        %v685 = vld [vmem:[%s262 + $0x98] sm:$0xff]
        %v686 = vld [vmem:[%s262 + $0xa0] sm:$0xff]
        %v687 = vld [vmem:[%s262 + $0xa8] sm:$0xff]
        %v688 = vld [vmem:[%s262 + $0xb0] sm:$0xff]
        %v689 = vld [vmem:[%s262 + $0xb8] sm:$0xff]
        %v690 = vld [vmem:[%s262 + $0xc0] sm:$0xff]
        %v691 = vld [vmem:[%s262 + $0xc8] sm:$0xff]
        %v692 = vld [vmem:[%s262 + $0xd0] sm:$0xff]
        %v693 = vld [vmem:[%s262 + $0xd8] sm:$0xff]
        %v694 = vld [vmem:[%s262 + $0xe0] sm:$0xff]
        %v695 = vld [vmem:[%s262 + $0xe8] sm:$0xff]
        %v696 = vld [vmem:[%s262 + $0xf0] sm:$0xff]
        %v697 = vld [vmem:[%s262 + $0xf8] sm:$0xff]
        %v698 = vld [vmem:[%s274] sm:$0xff]
        %v699 = vld [vmem:[%s274 + $0x8] sm:$0xff]
        %v700 = vld [vmem:[%s274 + $0x10] sm:$0xff]
        %v701 = vld [vmem:[%s274 + $0x18] sm:$0xff]
        %v702 = vld [vmem:[%s274 + $0x20] sm:$0xff]
        %v703 = vld [vmem:[%s274 + $0x28] sm:$0xff]
        %v704 = vld [vmem:[%s274 + $0x30] sm:$0xff]
        %v705 = vld [vmem:[%s274 + $0x38] sm:$0xff]
        %v706 = vld [vmem:[%s274 + $0x40] sm:$0xff]
        %v707 = vld [vmem:[%s274 + $0x48] sm:$0xff]
        %v708 = vld [vmem:[%s274 + $0x50] sm:$0xff]
        %v709 = vld [vmem:[%s274 + $0x58] sm:$0xff]
        %v710 = vld [vmem:[%s274 + $0x60] sm:$0xff]
        %v711 = vld [vmem:[%s274 + $0x68] sm:$0xff]
        %v712 = vld [vmem:[%s274 + $0x70] sm:$0xff]
        %v713 = vld [vmem:[%s274 + $0x78] sm:$0xff]
        %v714 = vld [vmem:[%s274 + $0x80] sm:$0xff]
        %v715 = vld [vmem:[%s274 + $0x88] sm:$0xff]
        %v716 = vld [vmem:[%s274 + $0x90] sm:$0xff]
        %v717 = vld [vmem:[%s274 + $0x98] sm:$0xff]
        %v718 = vld [vmem:[%s274 + $0xa0] sm:$0xff]
        %v719 = vld [vmem:[%s274 + $0xa8] sm:$0xff]
        %v720 = vld [vmem:[%s274 + $0xb0] sm:$0xff]
        %v721 = vld [vmem:[%s274 + $0xb8] sm:$0xff]
        %v722 = vld [vmem:[%s274 + $0xc0] sm:$0xff]
        %v723 = vld [vmem:[%s274 + $0xc8] sm:$0xff]
        %v724 = vld [vmem:[%s274 + $0xd0] sm:$0xff]
        %v725 = vld [vmem:[%s274 + $0xd8] sm:$0xff]
        %v726 = vld [vmem:[%s274 + $0xe0] sm:$0xff]
        %v727 = vld [vmem:[%s274 + $0xe8] sm:$0xff]
        %v728 = vld [vmem:[%s274 + $0xf0] sm:$0xff]
        %v729 = vld [vmem:[%s274 + $0xf8] sm:$0xff]
        %731 = vset.pattern.permute.xlu0 0
        %732 = vperm.xlu0 %731, %v698
        %v733 = vpop.permute.xlu0 %732
        %736 = vset.pattern.permute.xlu0 0
        %737 = vperm.xlu0 %736, %v699
        %v738 = vpop.permute.xlu0 %737
        %741 = vset.pattern.permute.xlu0 0
        %742 = vperm.xlu0 %741, %v700
        %v743 = vpop.permute.xlu0 %742
        %746 = vset.pattern.permute.xlu0 0
        %747 = vperm.xlu0 %746, %v701
        %v748 = vpop.permute.xlu0 %747
        %751 = vset.pattern.permute.xlu0 0
        %752 = vperm.xlu0 %751, %v702
        %v753 = vpop.permute.xlu0 %752
        %756 = vset.pattern.permute.xlu0 0
        %757 = vperm.xlu0 %756, %v703
        %v758 = vpop.permute.xlu0 %757
        %761 = vset.pattern.permute.xlu0 0
        %762 = vperm.xlu0 %761, %v704
        %v763 = vpop.permute.xlu0 %762
        %766 = vset.pattern.permute.xlu0 0
        %767 = vperm.xlu0 %766, %v705
        %v768 = vpop.permute.xlu0 %767
        %771 = vset.pattern.permute.xlu0 0
        %772 = vperm.xlu0 %771, %v706
        %v773 = vpop.permute.xlu0 %772
        %776 = vset.pattern.permute.xlu0 0
        %777 = vperm.xlu0 %776, %v707
        %v778 = vpop.permute.xlu0 %777
        %781 = vset.pattern.permute.xlu0 0
        %782 = vperm.xlu0 %781, %v708
        %v783 = vpop.permute.xlu0 %782
        %786 = vset.pattern.permute.xlu0 0
        %787 = vperm.xlu0 %786, %v709
        %v788 = vpop.permute.xlu0 %787
        %791 = vset.pattern.permute.xlu0 0
        %792 = vperm.xlu0 %791, %v710
        %v793 = vpop.permute.xlu0 %792
        %796 = vset.pattern.permute.xlu0 0
        %797 = vperm.xlu0 %796, %v711
        %v798 = vpop.permute.xlu0 %797
        %801 = vset.pattern.permute.xlu0 0
        %802 = vperm.xlu0 %801, %v712
        %v803 = vpop.permute.xlu0 %802
        %806 = vset.pattern.permute.xlu0 0
        %807 = vperm.xlu0 %806, %v713
        %v808 = vpop.permute.xlu0 %807
        %811 = vset.pattern.permute.xlu0 0
        %812 = vperm.xlu0 %811, %v714
        %v813 = vpop.permute.xlu0 %812
        %816 = vset.pattern.permute.xlu0 0
        %817 = vperm.xlu0 %816, %v715
        %v818 = vpop.permute.xlu0 %817
        %821 = vset.pattern.permute.xlu0 0
        %822 = vperm.xlu0 %821, %v716
        %v823 = vpop.permute.xlu0 %822
        %826 = vset.pattern.permute.xlu0 0
        %827 = vperm.xlu0 %826, %v717
        %v828 = vpop.permute.xlu0 %827
        %831 = vset.pattern.permute.xlu0 0
        %832 = vperm.xlu0 %831, %v718
        %v833 = vpop.permute.xlu0 %832
        %836 = vset.pattern.permute.xlu0 0
        %837 = vperm.xlu0 %836, %v719
        %v838 = vpop.permute.xlu0 %837
        %841 = vset.pattern.permute.xlu0 0
        %842 = vperm.xlu0 %841, %v720
        %v843 = vpop.permute.xlu0 %842
        %846 = vset.pattern.permute.xlu0 0
        %847 = vperm.xlu0 %846, %v721
        %v848 = vpop.permute.xlu0 %847
        %851 = vset.pattern.permute.xlu0 0
        %852 = vperm.xlu0 %851, %v722
        %v853 = vpop.permute.xlu0 %852
        %856 = vset.pattern.permute.xlu0 0
        %857 = vperm.xlu0 %856, %v723
        %v858 = vpop.permute.xlu0 %857
        %861 = vset.pattern.permute.xlu0 0
        %862 = vperm.xlu0 %861, %v724
        %v863 = vpop.permute.xlu0 %862
        %866 = vset.pattern.permute.xlu0 0
        %867 = vperm.xlu0 %866, %v725
        %v868 = vpop.permute.xlu0 %867
        %871 = vset.pattern.permute.xlu0 0
        %872 = vperm.xlu0 %871, %v726
        %v873 = vpop.permute.xlu0 %872
        %876 = vset.pattern.permute.xlu0 0
        %877 = vperm.xlu0 %876, %v727
        %v878 = vpop.permute.xlu0 %877
        %881 = vset.pattern.permute.xlu0 0
        %882 = vperm.xlu0 %881, %v728
        %v883 = vpop.permute.xlu0 %882
        %886 = vset.pattern.permute.xlu0 0
        %887 = vperm.xlu0 %886, %v729
        %v888 = vpop.permute.xlu0 %887
        %v890 = vmul.f32 %v666, %v733
        %v891 = vmul.f32 %v667, %v738
        %v892 = vmul.f32 %v668, %v743
        %v893 = vmul.f32 %v669, %v748
        %v894 = vmul.f32 %v670, %v753
        %v895 = vmul.f32 %v671, %v758
        %v896 = vmul.f32 %v672, %v763
        %v897 = vmul.f32 %v673, %v768
        %v898 = vmul.f32 %v674, %v773
        %v899 = vmul.f32 %v675, %v778
        %v900 = vmul.f32 %v676, %v783
        %v901 = vmul.f32 %v677, %v788
        %v902 = vmul.f32 %v678, %v793
        %v903 = vmul.f32 %v679, %v798
        %v904 = vmul.f32 %v680, %v803
        %v905 = vmul.f32 %v681, %v808
        %v906 = vmul.f32 %v682, %v813
        %v907 = vmul.f32 %v683, %v818
        %v908 = vmul.f32 %v684, %v823
        %v909 = vmul.f32 %v685, %v828
        %v910 = vmul.f32 %v686, %v833
        %v911 = vmul.f32 %v687, %v838
        %v912 = vmul.f32 %v688, %v843
        %v913 = vmul.f32 %v689, %v848
        %v914 = vmul.f32 %v690, %v853
        %v915 = vmul.f32 %v691, %v858
        %v916 = vmul.f32 %v692, %v863
        %v917 = vmul.f32 %v693, %v868
        %v918 = vmul.f32 %v694, %v873
        %v919 = vmul.f32 %v695, %v878
        %v920 = vmul.f32 %v696, %v883
        %v921 = vmul.f32 %v697, %v888
        %v922 = vld [vmem:[#allocation4] sm:$0xff]
        %v923 = vld [vmem:[#allocation4 + $0x8] sm:$0xff]
        %v924 = vld [vmem:[#allocation4 + $0x10] sm:$0xff]
        %v925 = vld [vmem:[#allocation4 + $0x18] sm:$0xff]
        %v926 = vld [vmem:[#allocation4 + $0x20] sm:$0xff]
        %v927 = vld [vmem:[#allocation4 + $0x28] sm:$0xff]
        %v928 = vld [vmem:[#allocation4 + $0x30] sm:$0xff]
        %v929 = vld [vmem:[#allocation4 + $0x38] sm:$0xff]
        %v930 = vld [vmem:[#allocation4 + $0x40] sm:$0xff]
        %v931 = vld [vmem:[#allocation4 + $0x48] sm:$0xff]
        %v932 = vld [vmem:[#allocation4 + $0x50] sm:$0xff]
        %v933 = vld [vmem:[#allocation4 + $0x58] sm:$0xff]
        %v934 = vld [vmem:[#allocation4 + $0x60] sm:$0xff]
        %v935 = vld [vmem:[#allocation4 + $0x68] sm:$0xff]
        %v936 = vld [vmem:[#allocation4 + $0x70] sm:$0xff]
        %v937 = vld [vmem:[#allocation4 + $0x78] sm:$0xff]
        %v938 = vld [vmem:[#allocation4 + $0x80] sm:$0xff]
        %v939 = vld [vmem:[#allocation4 + $0x88] sm:$0xff]
        %v940 = vld [vmem:[#allocation4 + $0x90] sm:$0xff]
        %v941 = vld [vmem:[#allocation4 + $0x98] sm:$0xff]
        %v942 = vld [vmem:[#allocation4 + $0xa0] sm:$0xff]
        %v943 = vld [vmem:[#allocation4 + $0xa8] sm:$0xff]
        %v944 = vld [vmem:[#allocation4 + $0xb0] sm:$0xff]
        %v945 = vld [vmem:[#allocation4 + $0xb8] sm:$0xff]
        %v946 = vld [vmem:[#allocation4 + $0xc0] sm:$0xff]
        %v947 = vld [vmem:[#allocation4 + $0xc8] sm:$0xff]
        %v948 = vld [vmem:[#allocation4 + $0xd0] sm:$0xff]
        %v949 = vld [vmem:[#allocation4 + $0xd8] sm:$0xff]
        %v950 = vld [vmem:[#allocation4 + $0xe0] sm:$0xff]
        %v951 = vld [vmem:[#allocation4 + $0xe8] sm:$0xff]
        %v952 = vld [vmem:[#allocation4 + $0xf0] sm:$0xff]
        %v953 = vld [vmem:[#allocation4 + $0xf8] sm:$0xff]
        %954 = vmatprep.subr.mxu0 0.0
        %955 = vmatpush1.xpose.msra.mxu0 %v890
        %956 = vmatprep.subr.mxu0 0.0
        %957 = vmatpush1.xpose.msra.mxu0 %v891
        %958 = vmatprep.subr.mxu0 0.0
        %959 = vmatpush1.xpose.msra.mxu0 %v892
        %960 = vmatprep.subr.mxu0 0.0
        %961 = vmatpush1.xpose.msra.mxu0 %v893
        %962 = vmatprep.subr.mxu0 0.0
        %963 = vmatpush1.xpose.msra.mxu0 %v894
        %964 = vmatprep.subr.mxu0 0.0
        %965 = vmatpush1.xpose.msra.mxu0 %v895
        %966 = vmatprep.subr.mxu0 0.0
        %967 = vmatpush1.xpose.msra.mxu0 %v896
        %968 = vmatprep.subr.mxu0 0.0
        %969 = vmatpush1.xpose.msra.mxu0 %v897
        %970 = vmatprep.subr.mxu0 0.0
        %971 = vmatpush1.xpose.msra.mxu0 %v898
        %972 = vmatprep.subr.mxu0 0.0
        %973 = vmatpush1.xpose.msra.mxu0 %v899
        %974 = vmatprep.subr.mxu0 0.0
        %975 = vmatpush1.xpose.msra.mxu0 %v900
        %976 = vmatprep.subr.mxu0 0.0
        %977 = vmatpush1.xpose.msra.mxu0 %v901
        %978 = vmatprep.subr.mxu0 0.0
        %979 = vmatpush1.xpose.msra.mxu0 %v902
        %980 = vmatprep.subr.mxu0 0.0
        %981 = vmatpush1.xpose.msra.mxu0 %v903
        %982 = vmatprep.subr.mxu0 0.0
        %983 = vmatpush1.xpose.msra.mxu0 %v904
        %984 = vmatprep.subr.mxu0 0.0
        %985 = vmatpush1.xpose.msra.mxu0 %v905
        %986 = vmatprep.subr.mxu0 0.0
        %987 = vmatpush1.xpose.msra.mxu0 %v906
        %988 = vmatprep.subr.mxu0 0.0
        %989 = vmatpush1.xpose.msra.mxu0 %v907
        %990 = vmatprep.subr.mxu0 0.0
        %991 = vmatpush1.xpose.msra.mxu0 %v908
        %992 = vmatprep.subr.mxu0 0.0
        %993 = vmatpush1.xpose.msra.mxu0 %v909
        %994 = vmatprep.subr.mxu0 0.0
        %995 = vmatpush1.xpose.msra.mxu0 %v910
        %996 = vmatprep.subr.mxu0 0.0
        %997 = vmatpush1.xpose.msra.mxu0 %v911
        %998 = vmatprep.subr.mxu0 0.0
        %999 = vmatpush1.xpose.msra.mxu0 %v912
        %1000 = vmatprep.subr.mxu0 0.0
        %1001 = vmatpush1.xpose.msra.mxu0 %v913
        %1002 = vmatprep.subr.mxu0 0.0
        %1003 = vmatpush1.xpose.msra.mxu0 %v914
        %1004 = vmatprep.subr.mxu0 0.0
        %1005 = vmatpush1.xpose.msra.mxu0 %v915
        %1006 = vmatprep.subr.mxu0 0.0
        %1007 = vmatpush1.xpose.msra.mxu0 %v916
        %1008 = vmatprep.subr.mxu0 0.0
        %1009 = vmatpush1.xpose.msra.mxu0 %v917
        %1010 = vmatprep.subr.mxu0 0.0
        %1011 = vmatpush1.xpose.msra.mxu0 %v918
        %1012 = vmatprep.subr.mxu0 0.0
        %1013 = vmatpush1.xpose.msra.mxu0 %v919
        %1014 = vmatprep.subr.mxu0 0.0
        %1015 = vmatpush1.xpose.msra.mxu0 %v920
        %1016 = vmatprep.subr.mxu0 0.0
        %1017 = vmatpush1.xpose.msra.mxu0 %v921
        %1018 = vmatprep.mubr.f32.mxu0 0.0
        %1019 = vmatmul.mubr.f32.gmra.mrb[0].mxu0 %v922
        %v1020 = vpop.f32.mrb[0].mxu0
        %v1021 = vadd.f32 0.0, %v1020
        %v1022 = vpop.f32.mrb[0].mxu0
        %v1023 = vadd.f32 0.0, %v1022
        %1024 = vmatprep.mubr.f32.mxu0 0.0
        %1025 = vmatmul.mubr.f32.gmra.mrb[0].mxu0 %v923
        %v1026 = vpop.f32.mrb[0].mxu0
        %v1027 = vadd.f32 0.0, %v1026
        %v1028 = vpop.f32.mrb[0].mxu0
        %v1029 = vadd.f32 0.0, %v1028
        %1030 = vmatprep.mubr.f32.mxu0 0.0
        %1031 = vmatmul.mubr.f32.gmra.mrb[0].mxu0 %v924
        %v1032 = vpop.f32.mrb[0].mxu0
        %v1033 = vadd.f32 0.0, %v1032
        %v1034 = vpop.f32.mrb[0].mxu0
        %v1035 = vadd.f32 0.0, %v1034
        %1036 = vmatprep.mubr.f32.mxu0 0.0
        %1037 = vmatmul.mubr.f32.gmra.mrb[0].mxu0 %v925
        %v1038 = vpop.f32.mrb[0].mxu0
        %v1039 = vadd.f32 0.0, %v1038
        %v1040 = vpop.f32.mrb[0].mxu0
        %v1041 = vadd.f32 0.0, %v1040
        %1042 = vmatprep.mubr.f32.mxu0 0.0
        %1043 = vmatmul.mubr.f32.gmra.mrb[0].mxu0 %v926
        %v1044 = vpop.f32.mrb[0].mxu0
        %v1045 = vadd.f32 0.0, %v1044
        %v1046 = vpop.f32.mrb[0].mxu0
        %v1047 = vadd.f32 0.0, %v1046
        %1048 = vmatprep.mubr.f32.mxu0 0.0
        %1049 = vmatmul.mubr.f32.gmra.mrb[0].mxu0 %v927
        %v1050 = vpop.f32.mrb[0].mxu0
        %v1051 = vadd.f32 0.0, %v1050
        %v1052 = vpop.f32.mrb[0].mxu0
        %v1053 = vadd.f32 0.0, %v1052
        %1054 = vmatprep.mubr.f32.mxu0 0.0
        %1055 = vmatmul.mubr.f32.gmra.mrb[0].mxu0 %v928
        %v1056 = vpop.f32.mrb[0].mxu0
        %v1057 = vadd.f32 0.0, %v1056
        %v1058 = vpop.f32.mrb[0].mxu0
        %v1059 = vadd.f32 0.0, %v1058
        %1060 = vmatprep.mubr.f32.mxu0 0.0
        %1061 = vmatmul.mubr.f32.gmra.mrb[0].mxu0 %v929
        %v1062 = vpop.f32.mrb[0].mxu0
        %v1063 = vadd.f32 0.0, %v1062
        %v1064 = vpop.f32.mrb[0].mxu0
        %v1065 = vadd.f32 0.0, %v1064
        %1066 = vmatprep.mubr.f32.mxu0 0.0
        %1067 = vmatmul.mubr.f32.gmra.mrb[0].mxu0 %v930
        %v1068 = vpop.f32.mrb[0].mxu0
        %v1069 = vadd.f32 0.0, %v1068
        %v1070 = vpop.f32.mrb[0].mxu0
        %v1071 = vadd.f32 0.0, %v1070
        %1072 = vmatprep.mubr.f32.mxu0 0.0
        %1073 = vmatmul.mubr.f32.gmra.mrb[0].mxu0 %v931
        %v1074 = vpop.f32.mrb[0].mxu0
        %v1075 = vadd.f32 0.0, %v1074
        %v1076 = vpop.f32.mrb[0].mxu0
        %v1077 = vadd.f32 0.0, %v1076
        %1078 = vmatprep.mubr.f32.mxu0 0.0
        %1079 = vmatmul.mubr.f32.gmra.mrb[0].mxu0 %v932
        %v1080 = vpop.f32.mrb[0].mxu0
        %v1081 = vadd.f32 0.0, %v1080
        %v1082 = vpop.f32.mrb[0].mxu0
        %v1083 = vadd.f32 0.0, %v1082
        %1084 = vmatprep.mubr.f32.mxu0 0.0
        %1085 = vmatmul.mubr.f32.gmra.mrb[0].mxu0 %v933
        %v1086 = vpop.f32.mrb[0].mxu0
        %v1087 = vadd.f32 0.0, %v1086
        %v1088 = vpop.f32.mrb[0].mxu0
        %v1089 = vadd.f32 0.0, %v1088
        %1090 = vmatprep.mubr.f32.mxu0 0.0
        %1091 = vmatmul.mubr.f32.gmra.mrb[0].mxu0 %v934
        %v1092 = vpop.f32.mrb[0].mxu0
        %v1093 = vadd.f32 0.0, %v1092
        %v1094 = vpop.f32.mrb[0].mxu0
        %v1095 = vadd.f32 0.0, %v1094
        %1096 = vmatprep.mubr.f32.mxu0 0.0
        %1097 = vmatmul.mubr.f32.gmra.mrb[0].mxu0 %v935
        %v1098 = vpop.f32.mrb[0].mxu0
        %v1099 = vadd.f32 0.0, %v1098
        %v1100 = vpop.f32.mrb[0].mxu0
        %v1101 = vadd.f32 0.0, %v1100
        %1102 = vmatprep.mubr.f32.mxu0 0.0
        %1103 = vmatmul.mubr.f32.gmra.mrb[0].mxu0 %v936
        %v1104 = vpop.f32.mrb[0].mxu0
        %v1105 = vadd.f32 0.0, %v1104
        %v1106 = vpop.f32.mrb[0].mxu0
        %v1107 = vadd.f32 0.0, %v1106
        %1108 = vmatprep.mubr.f32.mxu0 0.0
        %1109 = vmatmul.mubr.f32.gmra.mrb[0].mxu0 %v937
        %v1110 = vpop.f32.mrb[0].mxu0
        %v1111 = vadd.f32 0.0, %v1110
        %v1112 = vpop.f32.mrb[0].mxu0
        %v1113 = vadd.f32 0.0, %v1112
        %1114 = vmatprep.mubr.f32.mxu0 0.0
        %1115 = vmatmul.mubr.f32.gmra.mrb[0].mxu0 %v938
        %v1116 = vpop.f32.mrb[0].mxu0
        %v1117 = vadd.f32 0.0, %v1116
        %v1118 = vpop.f32.mrb[0].mxu0
        %v1119 = vadd.f32 0.0, %v1118
        %1120 = vmatprep.mubr.f32.mxu0 0.0
        %1121 = vmatmul.mubr.f32.gmra.mrb[0].mxu0 %v939
        %v1122 = vpop.f32.mrb[0].mxu0
        %v1123 = vadd.f32 0.0, %v1122
        %v1124 = vpop.f32.mrb[0].mxu0
        %v1125 = vadd.f32 0.0, %v1124
        %1126 = vmatprep.mubr.f32.mxu0 0.0
        %1127 = vmatmul.mubr.f32.gmra.mrb[0].mxu0 %v940
        %v1128 = vpop.f32.mrb[0].mxu0
        %v1129 = vadd.f32 0.0, %v1128
        %v1130 = vpop.f32.mrb[0].mxu0
        %v1131 = vadd.f32 0.0, %v1130
        %1132 = vmatprep.mubr.f32.mxu0 0.0
        %1133 = vmatmul.mubr.f32.gmra.mrb[0].mxu0 %v941
        %v1134 = vpop.f32.mrb[0].mxu0
        %v1135 = vadd.f32 0.0, %v1134
        %v1136 = vpop.f32.mrb[0].mxu0
        %v1137 = vadd.f32 0.0, %v1136
        %1138 = vmatprep.mubr.f32.mxu0 0.0
        %1139 = vmatmul.mubr.f32.gmra.mrb[0].mxu0 %v942
        %v1140 = vpop.f32.mrb[0].mxu0
        %v1141 = vadd.f32 0.0, %v1140
        %v1142 = vpop.f32.mrb[0].mxu0
        %v1143 = vadd.f32 0.0, %v1142
        %1144 = vmatprep.mubr.f32.mxu0 0.0
        %1145 = vmatmul.mubr.f32.gmra.mrb[0].mxu0 %v943
        %v1146 = vpop.f32.mrb[0].mxu0
        %v1147 = vadd.f32 0.0, %v1146
        %v1148 = vpop.f32.mrb[0].mxu0
        %v1149 = vadd.f32 0.0, %v1148
        %1150 = vmatprep.mubr.f32.mxu0 0.0
        %1151 = vmatmul.mubr.f32.gmra.mrb[0].mxu0 %v944
        %v1152 = vpop.f32.mrb[0].mxu0
        %v1153 = vadd.f32 0.0, %v1152
        %v1154 = vpop.f32.mrb[0].mxu0
        %v1155 = vadd.f32 0.0, %v1154
        %1156 = vmatprep.mubr.f32.mxu0 0.0
        %1157 = vmatmul.mubr.f32.gmra.mrb[0].mxu0 %v945
        %v1158 = vpop.f32.mrb[0].mxu0
        %v1159 = vadd.f32 0.0, %v1158
        %v1160 = vpop.f32.mrb[0].mxu0
        %v1161 = vadd.f32 0.0, %v1160
        %1162 = vmatprep.mubr.f32.mxu0 0.0
        %1163 = vmatmul.mubr.f32.gmra.mrb[0].mxu0 %v946
        %v1164 = vpop.f32.mrb[0].mxu0
        %v1165 = vadd.f32 0.0, %v1164
        %v1166 = vpop.f32.mrb[0].mxu0
        %v1167 = vadd.f32 0.0, %v1166
        %1168 = vmatprep.mubr.f32.mxu0 0.0
        %1169 = vmatmul.mubr.f32.gmra.mrb[0].mxu0 %v947
        %v1170 = vpop.f32.mrb[0].mxu0
        %v1171 = vadd.f32 0.0, %v1170
        %v1172 = vpop.f32.mrb[0].mxu0
        %v1173 = vadd.f32 0.0, %v1172
        %1174 = vmatprep.mubr.f32.mxu0 0.0
        %1175 = vmatmul.mubr.f32.gmra.mrb[0].mxu0 %v948
        %v1176 = vpop.f32.mrb[0].mxu0
        %v1177 = vadd.f32 0.0, %v1176
        %v1178 = vpop.f32.mrb[0].mxu0
        %v1179 = vadd.f32 0.0, %v1178
        %1180 = vmatprep.mubr.f32.mxu0 0.0
        %1181 = vmatmul.mubr.f32.gmra.mrb[0].mxu0 %v949
        %v1182 = vpop.f32.mrb[0].mxu0
        %v1183 = vadd.f32 0.0, %v1182
        %v1184 = vpop.f32.mrb[0].mxu0
        %v1185 = vadd.f32 0.0, %v1184
        %1186 = vmatprep.mubr.f32.mxu0 0.0
        %1187 = vmatmul.mubr.f32.gmra.mrb[0].mxu0 %v950
        %v1188 = vpop.f32.mrb[0].mxu0
        %v1189 = vadd.f32 0.0, %v1188
        %v1190 = vpop.f32.mrb[0].mxu0
        %v1191 = vadd.f32 0.0, %v1190
        %1192 = vmatprep.mubr.f32.mxu0 0.0
        %1193 = vmatmul.mubr.f32.gmra.mrb[0].mxu0 %v951
        %v1194 = vpop.f32.mrb[0].mxu0
        %v1195 = vadd.f32 0.0, %v1194
        %v1196 = vpop.f32.mrb[0].mxu0
        %v1197 = vadd.f32 0.0, %v1196
        %1198 = vmatprep.mubr.f32.mxu0 0.0
        %1199 = vmatmul.mubr.f32.gmra.mrb[0].mxu0 %v952
        %v1200 = vpop.f32.mrb[0].mxu0
        %v1201 = vadd.f32 0.0, %v1200
        %v1202 = vpop.f32.mrb[0].mxu0
        %v1203 = vadd.f32 0.0, %v1202
        %1204 = vmatprep.mubr.f32.mxu0 0.0
        %1205 = vmatmul.mubr.f32.gmra.mrb[0].mxu0 %v953
        %v1206 = vpop.f32.mrb[0].mxu0
        %v1207 = vadd.f32 0.0, %v1206
        %v1208 = vpop.f32.mrb[0].mxu0
        %v1209 = vadd.f32 0.0, %v1208
        %1210 = vdwg.mxu0
        %v1211 = vsub.f32 %v1021, 10.0
        %v1212 = vsub.f32 %v1023, 10.0
        %v1213 = vsub.f32 %v1027, 10.0
        %v1214 = vsub.f32 %v1029, 10.0
        %v1215 = vsub.f32 %v1033, 10.0
        %v1216 = vsub.f32 %v1035, 10.0
        %v1217 = vsub.f32 %v1039, 10.0
        %v1218 = vsub.f32 %v1041, 10.0
        %v1219 = vsub.f32 %v1045, 10.0
        %v1220 = vsub.f32 %v1047, 10.0
        %v1221 = vsub.f32 %v1051, 10.0
        %v1222 = vsub.f32 %v1053, 10.0
        %v1223 = vsub.f32 %v1057, 10.0
        %v1224 = vsub.f32 %v1059, 10.0
        %v1225 = vsub.f32 %v1063, 10.0
        %v1226 = vsub.f32 %v1065, 10.0
        %v1227 = vsub.f32 %v1069, 10.0
        %v1228 = vsub.f32 %v1071, 10.0
        %v1229 = vsub.f32 %v1075, 10.0
        %v1230 = vsub.f32 %v1077, 10.0
        %v1231 = vsub.f32 %v1081, 10.0
        %v1232 = vsub.f32 %v1083, 10.0
        %v1233 = vsub.f32 %v1087, 10.0
        %v1234 = vsub.f32 %v1089, 10.0
        %v1235 = vsub.f32 %v1093, 10.0
        %v1236 = vsub.f32 %v1095, 10.0
        %v1237 = vsub.f32 %v1099, 10.0
        %v1238 = vsub.f32 %v1101, 10.0
        %v1239 = vsub.f32 %v1105, 10.0
        %v1240 = vsub.f32 %v1107, 10.0
        %v1241 = vsub.f32 %v1111, 10.0
        %v1242 = vsub.f32 %v1113, 10.0
        %v1243 = vsub.f32 %v1117, 10.0
        %v1244 = vsub.f32 %v1119, 10.0
        %v1245 = vsub.f32 %v1123, 10.0
        %v1246 = vsub.f32 %v1125, 10.0
        %v1247 = vsub.f32 %v1129, 10.0
        %v1248 = vsub.f32 %v1131, 10.0
        %v1249 = vsub.f32 %v1135, 10.0
        %v1250 = vsub.f32 %v1137, 10.0
        %v1251 = vsub.f32 %v1141, 10.0
        %v1252 = vsub.f32 %v1143, 10.0
        %v1253 = vsub.f32 %v1147, 10.0
        %v1254 = vsub.f32 %v1149, 10.0
        %v1255 = vsub.f32 %v1153, 10.0
        %v1256 = vsub.f32 %v1155, 10.0
        %v1257 = vsub.f32 %v1159, 10.0
        %v1258 = vsub.f32 %v1161, 10.0
        %v1259 = vsub.f32 %v1165, 10.0
        %v1260 = vsub.f32 %v1167, 10.0
        %v1261 = vsub.f32 %v1171, 10.0
        %v1262 = vsub.f32 %v1173, 10.0
        %v1263 = vsub.f32 %v1177, 10.0
        %v1264 = vsub.f32 %v1179, 10.0
        %v1265 = vsub.f32 %v1183, 10.0
        %v1266 = vsub.f32 %v1185, 10.0
        %v1267 = vsub.f32 %v1189, 10.0
        %v1268 = vsub.f32 %v1191, 10.0
        %v1269 = vsub.f32 %v1195, 10.0
        %v1270 = vsub.f32 %v1197, 10.0
        %v1271 = vsub.f32 %v1201, 10.0
        %v1272 = vsub.f32 %v1203, 10.0
        %v1273 = vsub.f32 %v1207, 10.0
        %v1274 = vsub.f32 %v1209, 10.0
        %v1275 = vmul.f32 %v1211, 1.442695
        %v1276 = vpow.pop %v1275
        %v1277 = vmul.f32 %v1212, 1.442695
        %v1278 = vpow.pop %v1277
        %v1279 = vmul.f32 %v1213, 1.442695
        %v1280 = vpow.pop %v1279
        %v1281 = vmul.f32 %v1214, 1.442695
        %v1282 = vpow.pop %v1281
        %v1283 = vmul.f32 %v1215, 1.442695
        %v1284 = vpow.pop %v1283
        %v1285 = vmul.f32 %v1216, 1.442695
        %v1286 = vpow.pop %v1285
        %v1287 = vmul.f32 %v1217, 1.442695
        %v1288 = vpow.pop %v1287
        %v1289 = vmul.f32 %v1218, 1.442695
        %v1290 = vpow.pop %v1289
        %v1291 = vmul.f32 %v1219, 1.442695
        %v1292 = vpow.pop %v1291
        %v1293 = vmul.f32 %v1220, 1.442695
        %v1294 = vpow.pop %v1293
        %v1295 = vmul.f32 %v1221, 1.442695
        %v1296 = vpow.pop %v1295
        %v1297 = vmul.f32 %v1222, 1.442695
        %v1298 = vpow.pop %v1297
        %v1299 = vmul.f32 %v1223, 1.442695
        %v1300 = vpow.pop %v1299
        %v1301 = vmul.f32 %v1224, 1.442695
        %v1302 = vpow.pop %v1301
        %v1303 = vmul.f32 %v1225, 1.442695
        %v1304 = vpow.pop %v1303
        %v1305 = vmul.f32 %v1226, 1.442695
        %v1306 = vpow.pop %v1305
        %v1307 = vmul.f32 %v1227, 1.442695
        %v1308 = vpow.pop %v1307
        %v1309 = vmul.f32 %v1228, 1.442695
        %v1310 = vpow.pop %v1309
        %v1311 = vmul.f32 %v1229, 1.442695
        %v1312 = vpow.pop %v1311
        %v1313 = vmul.f32 %v1230, 1.442695
        %v1314 = vpow.pop %v1313
        %v1315 = vmul.f32 %v1231, 1.442695
        %v1316 = vpow.pop %v1315
        %v1317 = vmul.f32 %v1232, 1.442695
        %v1318 = vpow.pop %v1317
        %v1319 = vmul.f32 %v1233, 1.442695
        %v1320 = vpow.pop %v1319
        %v1321 = vmul.f32 %v1234, 1.442695
        %v1322 = vpow.pop %v1321
        %v1323 = vmul.f32 %v1235, 1.442695
        %v1324 = vpow.pop %v1323
        %v1325 = vmul.f32 %v1236, 1.442695
        %v1326 = vpow.pop %v1325
        %v1327 = vmul.f32 %v1237, 1.442695
        %v1328 = vpow.pop %v1327
        %v1329 = vmul.f32 %v1238, 1.442695
        %v1330 = vpow.pop %v1329
        %v1331 = vmul.f32 %v1239, 1.442695
        %v1332 = vpow.pop %v1331
        %v1333 = vmul.f32 %v1240, 1.442695
        %v1334 = vpow.pop %v1333
        %v1335 = vmul.f32 %v1241, 1.442695
        %v1336 = vpow.pop %v1335
        %v1337 = vmul.f32 %v1242, 1.442695
        %v1338 = vpow.pop %v1337
        %v1339 = vmul.f32 %v1243, 1.442695
        %v1340 = vpow.pop %v1339
        %v1341 = vmul.f32 %v1244, 1.442695
        %v1342 = vpow.pop %v1341
        %v1343 = vmul.f32 %v1245, 1.442695
        %v1344 = vpow.pop %v1343
        %v1345 = vmul.f32 %v1246, 1.442695
        %v1346 = vpow.pop %v1345
        %v1347 = vmul.f32 %v1247, 1.442695
        %v1348 = vpow.pop %v1347
        %v1349 = vmul.f32 %v1248, 1.442695
        %v1350 = vpow.pop %v1349
        %v1351 = vmul.f32 %v1249, 1.442695
        %v1352 = vpow.pop %v1351
        %v1353 = vmul.f32 %v1250, 1.442695
        %v1354 = vpow.pop %v1353
        %v1355 = vmul.f32 %v1251, 1.442695
        %v1356 = vpow.pop %v1355
        %v1357 = vmul.f32 %v1252, 1.442695
        %v1358 = vpow.pop %v1357
        %v1359 = vmul.f32 %v1253, 1.442695
        %v1360 = vpow.pop %v1359
        %v1361 = vmul.f32 %v1254, 1.442695
        %v1362 = vpow.pop %v1361
        %v1363 = vmul.f32 %v1255, 1.442695
        %v1364 = vpow.pop %v1363
        %v1365 = vmul.f32 %v1256, 1.442695
        %v1366 = vpow.pop %v1365
        %v1367 = vmul.f32 %v1257, 1.442695
        %v1368 = vpow.pop %v1367
        %v1369 = vmul.f32 %v1258, 1.442695
        %v1370 = vpow.pop %v1369
        %v1371 = vmul.f32 %v1259, 1.442695
        %v1372 = vpow.pop %v1371
        %v1373 = vmul.f32 %v1260, 1.442695
        %v1374 = vpow.pop %v1373
        %v1375 = vmul.f32 %v1261, 1.442695
        %v1376 = vpow.pop %v1375
        %v1377 = vmul.f32 %v1262, 1.442695
        %v1378 = vpow.pop %v1377
        %v1379 = vmul.f32 %v1263, 1.442695
        %v1380 = vpow.pop %v1379
        %v1381 = vmul.f32 %v1264, 1.442695
        %v1382 = vpow.pop %v1381
        %v1383 = vmul.f32 %v1265, 1.442695
        %v1384 = vpow.pop %v1383
        %v1385 = vmul.f32 %v1266, 1.442695
        %v1386 = vpow.pop %v1385
        %v1387 = vmul.f32 %v1267, 1.442695
        %v1388 = vpow.pop %v1387
        %v1389 = vmul.f32 %v1268, 1.442695
        %v1390 = vpow.pop %v1389
        %v1391 = vmul.f32 %v1269, 1.442695
        %v1392 = vpow.pop %v1391
        %v1393 = vmul.f32 %v1270, 1.442695
        %v1394 = vpow.pop %v1393
        %v1395 = vmul.f32 %v1271, 1.442695
        %v1396 = vpow.pop %v1395
        %v1397 = vmul.f32 %v1272, 1.442695
        %v1398 = vpow.pop %v1397
        %v1399 = vmul.f32 %v1273, 1.442695
        %v1400 = vpow.pop %v1399
        %v1401 = vmul.f32 %v1274, 1.442695
        %v1402 = vpow.pop %v1401
        %v1403 = vld [vmem:[#allocation2] sm:$0xff]
        %v1404 = vld [vmem:[#allocation2 + $0x8] sm:$0xff]
        %v1405 = vld [vmem:[#allocation2 + $0x10] sm:$0xff]
        %v1406 = vld [vmem:[#allocation2 + $0x18] sm:$0xff]
        %v1407 = vld [vmem:[#allocation2 + $0x20] sm:$0xff]
        %v1408 = vld [vmem:[#allocation2 + $0x28] sm:$0xff]
        %v1409 = vld [vmem:[#allocation2 + $0x30] sm:$0xff]
        %v1410 = vld [vmem:[#allocation2 + $0x38] sm:$0xff]
        %v1411 = vld [vmem:[#allocation2 + $0x40] sm:$0xff]
        %v1412 = vld [vmem:[#allocation2 + $0x48] sm:$0xff]
        %v1413 = vld [vmem:[#allocation2 + $0x50] sm:$0xff]
        %v1414 = vld [vmem:[#allocation2 + $0x58] sm:$0xff]
        %v1415 = vld [vmem:[#allocation2 + $0x60] sm:$0xff]
        %v1416 = vld [vmem:[#allocation2 + $0x68] sm:$0xff]
        %v1417 = vld [vmem:[#allocation2 + $0x70] sm:$0xff]
        %v1418 = vld [vmem:[#allocation2 + $0x78] sm:$0xff]
        %v1419 = vld [vmem:[#allocation2 + $0x80] sm:$0xff]
        %v1420 = vld [vmem:[#allocation2 + $0x88] sm:$0xff]
        %v1421 = vld [vmem:[#allocation2 + $0x90] sm:$0xff]
        %v1422 = vld [vmem:[#allocation2 + $0x98] sm:$0xff]
        %v1423 = vld [vmem:[#allocation2 + $0xa0] sm:$0xff]
        %v1424 = vld [vmem:[#allocation2 + $0xa8] sm:$0xff]
        %v1425 = vld [vmem:[#allocation2 + $0xb0] sm:$0xff]
        %v1426 = vld [vmem:[#allocation2 + $0xb8] sm:$0xff]
        %v1427 = vld [vmem:[#allocation2 + $0xc0] sm:$0xff]
        %v1428 = vld [vmem:[#allocation2 + $0xc8] sm:$0xff]
        %v1429 = vld [vmem:[#allocation2 + $0xd0] sm:$0xff]
        %v1430 = vld [vmem:[#allocation2 + $0xd8] sm:$0xff]
        %v1431 = vld [vmem:[#allocation2 + $0xe0] sm:$0xff]
        %v1432 = vld [vmem:[#allocation2 + $0xe8] sm:$0xff]
        %v1433 = vld [vmem:[#allocation2 + $0xf0] sm:$0xff]
        %v1434 = vld [vmem:[#allocation2 + $0xf8] sm:$0xff]
        %v1435 = vadd.f32 %v1276, %v1278
        %1436 = vadd.xlane.f32.xlu0 %v1435
        %v1437 = vpop.xlane.xlu0 %1436
        %v1438 = vadd.f32 %v1280, %v1282
        %1439 = vadd.xlane.f32.xlu0 %v1438
        %v1440 = vpop.xlane.xlu0 %1439
        %v1441 = vadd.f32 %v1284, %v1286
        %1442 = vadd.xlane.f32.xlu0 %v1441
        %v1443 = vpop.xlane.xlu0 %1442
        %v1444 = vadd.f32 %v1288, %v1290
        %1445 = vadd.xlane.f32.xlu0 %v1444
        %v1446 = vpop.xlane.xlu0 %1445
        %v1447 = vadd.f32 %v1292, %v1294
        %1448 = vadd.xlane.f32.xlu0 %v1447
        %v1449 = vpop.xlane.xlu0 %1448
        %v1450 = vadd.f32 %v1296, %v1298
        %1451 = vadd.xlane.f32.xlu0 %v1450
        %v1452 = vpop.xlane.xlu0 %1451
        %v1453 = vadd.f32 %v1300, %v1302
        %1454 = vadd.xlane.f32.xlu0 %v1453
        %v1455 = vpop.xlane.xlu0 %1454
        %v1456 = vadd.f32 %v1304, %v1306
        %1457 = vadd.xlane.f32.xlu0 %v1456
        %v1458 = vpop.xlane.xlu0 %1457
        %v1459 = vadd.f32 %v1308, %v1310
        %1460 = vadd.xlane.f32.xlu0 %v1459
        %v1461 = vpop.xlane.xlu0 %1460
        %v1462 = vadd.f32 %v1312, %v1314
        %1463 = vadd.xlane.f32.xlu0 %v1462
        %v1464 = vpop.xlane.xlu0 %1463
        %v1465 = vadd.f32 %v1316, %v1318
        %1466 = vadd.xlane.f32.xlu0 %v1465
        %v1467 = vpop.xlane.xlu0 %1466
        %v1468 = vadd.f32 %v1320, %v1322
        %1469 = vadd.xlane.f32.xlu0 %v1468
        %v1470 = vpop.xlane.xlu0 %1469
        %v1471 = vadd.f32 %v1324, %v1326
        %1472 = vadd.xlane.f32.xlu0 %v1471
        %v1473 = vpop.xlane.xlu0 %1472
        %v1474 = vadd.f32 %v1328, %v1330
        %1475 = vadd.xlane.f32.xlu0 %v1474
        %v1476 = vpop.xlane.xlu0 %1475
        %v1477 = vadd.f32 %v1332, %v1334
        %1478 = vadd.xlane.f32.xlu0 %v1477
        %v1479 = vpop.xlane.xlu0 %1478
        %v1480 = vadd.f32 %v1336, %v1338
        %1481 = vadd.xlane.f32.xlu0 %v1480
        %v1482 = vpop.xlane.xlu0 %1481
        %v1483 = vadd.f32 %v1340, %v1342
        %1484 = vadd.xlane.f32.xlu0 %v1483
        %v1485 = vpop.xlane.xlu0 %1484
        %v1486 = vadd.f32 %v1344, %v1346
        %1487 = vadd.xlane.f32.xlu0 %v1486
        %v1488 = vpop.xlane.xlu0 %1487
        %v1489 = vadd.f32 %v1348, %v1350
        %1490 = vadd.xlane.f32.xlu0 %v1489
        %v1491 = vpop.xlane.xlu0 %1490
        %v1492 = vadd.f32 %v1352, %v1354
        %1493 = vadd.xlane.f32.xlu0 %v1492
        %v1494 = vpop.xlane.xlu0 %1493
        %v1495 = vadd.f32 %v1356, %v1358
        %1496 = vadd.xlane.f32.xlu0 %v1495
        %v1497 = vpop.xlane.xlu0 %1496
        %v1498 = vadd.f32 %v1360, %v1362
        %1499 = vadd.xlane.f32.xlu0 %v1498
        %v1500 = vpop.xlane.xlu0 %1499
        %v1501 = vadd.f32 %v1364, %v1366
        %1502 = vadd.xlane.f32.xlu0 %v1501
        %v1503 = vpop.xlane.xlu0 %1502
        %v1504 = vadd.f32 %v1368, %v1370
        %1505 = vadd.xlane.f32.xlu0 %v1504
        %v1506 = vpop.xlane.xlu0 %1505
        %v1507 = vadd.f32 %v1372, %v1374
        %1508 = vadd.xlane.f32.xlu0 %v1507
        %v1509 = vpop.xlane.xlu0 %1508
        %v1510 = vadd.f32 %v1376, %v1378
        %1511 = vadd.xlane.f32.xlu0 %v1510
        %v1512 = vpop.xlane.xlu0 %1511
        %v1513 = vadd.f32 %v1380, %v1382
        %1514 = vadd.xlane.f32.xlu0 %v1513
        %v1515 = vpop.xlane.xlu0 %1514
        %v1516 = vadd.f32 %v1384, %v1386
        %1517 = vadd.xlane.f32.xlu0 %v1516
        %v1518 = vpop.xlane.xlu0 %1517
        %v1519 = vadd.f32 %v1388, %v1390
        %1520 = vadd.xlane.f32.xlu0 %v1519
        %v1521 = vpop.xlane.xlu0 %1520
        %v1522 = vadd.f32 %v1392, %v1394
        %1523 = vadd.xlane.f32.xlu0 %v1522
        %v1524 = vpop.xlane.xlu0 %1523
        %v1525 = vadd.f32 %v1396, %v1398
        %1526 = vadd.xlane.f32.xlu0 %v1525
        %v1527 = vpop.xlane.xlu0 %1526
        %v1528 = vadd.f32 %v1400, %v1402
        %1529 = vadd.xlane.f32.xlu0 %v1528
        %v1530 = vpop.xlane.xlu0 %1529
        %v1531 = vadd.f32 %v1403, %v1437
        %v1532 = vadd.f32 %v1404, %v1440
        %v1533 = vadd.f32 %v1405, %v1443
        %v1534 = vadd.f32 %v1406, %v1446
        %v1535 = vadd.f32 %v1407, %v1449
        %v1536 = vadd.f32 %v1408, %v1452
        %v1537 = vadd.f32 %v1409, %v1455
        %v1538 = vadd.f32 %v1410, %v1458
        %v1539 = vadd.f32 %v1411, %v1461
        %v1540 = vadd.f32 %v1412, %v1464
        %v1541 = vadd.f32 %v1413, %v1467
        %v1542 = vadd.f32 %v1414, %v1470
        %v1543 = vadd.f32 %v1415, %v1473
        %v1544 = vadd.f32 %v1416, %v1476
        %v1545 = vadd.f32 %v1417, %v1479
        %v1546 = vadd.f32 %v1418, %v1482
        %v1547 = vadd.f32 %v1419, %v1485
        %v1548 = vadd.f32 %v1420, %v1488
        %v1549 = vadd.f32 %v1421, %v1491
        %v1550 = vadd.f32 %v1422, %v1494
        %v1551 = vadd.f32 %v1423, %v1497
        %v1552 = vadd.f32 %v1424, %v1500
        %v1553 = vadd.f32 %v1425, %v1503
        %v1554 = vadd.f32 %v1426, %v1506
        %v1555 = vadd.f32 %v1427, %v1509
        %v1556 = vadd.f32 %v1428, %v1512
        %v1557 = vadd.f32 %v1429, %v1515
        %v1558 = vadd.f32 %v1430, %v1518
        %v1559 = vadd.f32 %v1431, %v1521
        %v1560 = vadd.f32 %v1432, %v1524
        %v1561 = vadd.f32 %v1433, %v1527
        %v1562 = vadd.f32 %v1434, %v1530
        %vm1563 = vcmask 7168
        %1564 = vst.msk [vmem:[#allocation2] sm:$0xff] %vm1563, %v1531
        %1565 = vst.msk [vmem:[#allocation2 + $0x8] sm:$0xff] %vm1563, %v1532
        %1566 = vst.msk [vmem:[#allocation2 + $0x10] sm:$0xff] %vm1563, %v1533
        %1567 = vst.msk [vmem:[#allocation2 + $0x18] sm:$0xff] %vm1563, %v1534
        %1568 = vst.msk [vmem:[#allocation2 + $0x20] sm:$0xff] %vm1563, %v1535
        %1569 = vst.msk [vmem:[#allocation2 + $0x28] sm:$0xff] %vm1563, %v1536
        %1570 = vst.msk [vmem:[#allocation2 + $0x30] sm:$0xff] %vm1563, %v1537
        %1571 = vst.msk [vmem:[#allocation2 + $0x38] sm:$0xff] %vm1563, %v1538
        %1572 = vst.msk [vmem:[#allocation2 + $0x40] sm:$0xff] %vm1563, %v1539
        %1573 = vst.msk [vmem:[#allocation2 + $0x48] sm:$0xff] %vm1563, %v1540
        %1574 = vst.msk [vmem:[#allocation2 + $0x50] sm:$0xff] %vm1563, %v1541
        %1575 = vst.msk [vmem:[#allocation2 + $0x58] sm:$0xff] %vm1563, %v1542
        %1576 = vst.msk [vmem:[#allocation2 + $0x60] sm:$0xff] %vm1563, %v1543
        %1577 = vst.msk [vmem:[#allocation2 + $0x68] sm:$0xff] %vm1563, %v1544
        %1578 = vst.msk [vmem:[#allocation2 + $0x70] sm:$0xff] %vm1563, %v1545
        %1579 = vst.msk [vmem:[#allocation2 + $0x78] sm:$0xff] %vm1563, %v1546
        %1580 = vst.msk [vmem:[#allocation2 + $0x80] sm:$0xff] %vm1563, %v1547
        %1581 = vst.msk [vmem:[#allocation2 + $0x88] sm:$0xff] %vm1563, %v1548
        %1582 = vst.msk [vmem:[#allocation2 + $0x90] sm:$0xff] %vm1563, %v1549
        %1583 = vst.msk [vmem:[#allocation2 + $0x98] sm:$0xff] %vm1563, %v1550
        %1584 = vst.msk [vmem:[#allocation2 + $0xa0] sm:$0xff] %vm1563, %v1551
        %1585 = vst.msk [vmem:[#allocation2 + $0xa8] sm:$0xff] %vm1563, %v1552
        %1586 = vst.msk [vmem:[#allocation2 + $0xb0] sm:$0xff] %vm1563, %v1553
        %1587 = vst.msk [vmem:[#allocation2 + $0xb8] sm:$0xff] %vm1563, %v1554
        %1588 = vst.msk [vmem:[#allocation2 + $0xc0] sm:$0xff] %vm1563, %v1555
        %1589 = vst.msk [vmem:[#allocation2 + $0xc8] sm:$0xff] %vm1563, %v1556
        %1590 = vst.msk [vmem:[#allocation2 + $0xd0] sm:$0xff] %vm1563, %v1557
        %1591 = vst.msk [vmem:[#allocation2 + $0xd8] sm:$0xff] %vm1563, %v1558
        %1592 = vst.msk [vmem:[#allocation2 + $0xe0] sm:$0xff] %vm1563, %v1559
        %1593 = vst.msk [vmem:[#allocation2 + $0xe8] sm:$0xff] %vm1563, %v1560
        %1594 = vst.msk [vmem:[#allocation2 + $0xf0] sm:$0xff] %vm1563, %v1561
        %1595 = vst.msk [vmem:[#allocation2 + $0xf8] sm:$0xff] %vm1563, %v1562
        %v1596 = vld [vmem:[#allocation3] sm:$0xff]
        %v1597 = vld [vmem:[#allocation3 + $0x8] sm:$0xff]
        %v1598 = vld [vmem:[#allocation3 + $0x10] sm:$0xff]
        %v1599 = vld [vmem:[#allocation3 + $0x18] sm:$0xff]
        %v1600 = vld [vmem:[#allocation3 + $0x20] sm:$0xff]
        %v1601 = vld [vmem:[#allocation3 + $0x28] sm:$0xff]
        %v1602 = vld [vmem:[#allocation3 + $0x30] sm:$0xff]
        %v1603 = vld [vmem:[#allocation3 + $0x38] sm:$0xff]
        %v1604 = vld [vmem:[#allocation3 + $0x40] sm:$0xff]
        %v1605 = vld [vmem:[#allocation3 + $0x48] sm:$0xff]
        %v1606 = vld [vmem:[#allocation3 + $0x50] sm:$0xff]
        %v1607 = vld [vmem:[#allocation3 + $0x58] sm:$0xff]
        %v1608 = vld [vmem:[#allocation3 + $0x60] sm:$0xff]
        %v1609 = vld [vmem:[#allocation3 + $0x68] sm:$0xff]
        %v1610 = vld [vmem:[#allocation3 + $0x70] sm:$0xff]
        %v1611 = vld [vmem:[#allocation3 + $0x78] sm:$0xff]
        %v1612 = vld [vmem:[#allocation3 + $0x80] sm:$0xff]
        %v1613 = vld [vmem:[#allocation3 + $0x88] sm:$0xff]
        %v1614 = vld [vmem:[#allocation3 + $0x90] sm:$0xff]
        %v1615 = vld [vmem:[#allocation3 + $0x98] sm:$0xff]
        %v1616 = vld [vmem:[#allocation3 + $0xa0] sm:$0xff]
        %v1617 = vld [vmem:[#allocation3 + $0xa8] sm:$0xff]
        %v1618 = vld [vmem:[#allocation3 + $0xb0] sm:$0xff]
        %v1619 = vld [vmem:[#allocation3 + $0xb8] sm:$0xff]
        %v1620 = vld [vmem:[#allocation3 + $0xc0] sm:$0xff]
        %v1621 = vld [vmem:[#allocation3 + $0xc8] sm:$0xff]
        %v1622 = vld [vmem:[#allocation3 + $0xd0] sm:$0xff]
        %v1623 = vld [vmem:[#allocation3 + $0xd8] sm:$0xff]
        %v1624 = vld [vmem:[#allocation3 + $0xe0] sm:$0xff]
        %v1625 = vld [vmem:[#allocation3 + $0xe8] sm:$0xff]
        %v1626 = vld [vmem:[#allocation3 + $0xf0] sm:$0xff]
        %v1627 = vld [vmem:[#allocation3 + $0xf8] sm:$0xff]
        %1628 = vmatprep.subr.mxu0 0.0
        %1629 = vmatpush1.msra.mxu0 %v666
        %1630 = vmatprep.subr.mxu0 0.0
        %1631 = vmatpush1.msra.mxu0 %v667
        %1632 = vmatprep.subr.mxu0 0.0
        %1633 = vmatpush1.msra.mxu0 %v668
        %1634 = vmatprep.subr.mxu0 0.0
        %1635 = vmatpush1.msra.mxu0 %v669
        %1636 = vmatprep.subr.mxu0 0.0
        %1637 = vmatpush1.msra.mxu0 %v670
        %1638 = vmatprep.subr.mxu0 0.0
        %1639 = vmatpush1.msra.mxu0 %v671
        %1640 = vmatprep.subr.mxu0 0.0
        %1641 = vmatpush1.msra.mxu0 %v672
        %1642 = vmatprep.subr.mxu0 0.0
        %1643 = vmatpush1.msra.mxu0 %v673
        %1644 = vmatprep.subr.mxu0 0.0
        %1645 = vmatpush1.msra.mxu0 %v674
        %1646 = vmatprep.subr.mxu0 0.0
        %1647 = vmatpush1.msra.mxu0 %v675
        %1648 = vmatprep.subr.mxu0 0.0
        %1649 = vmatpush1.msra.mxu0 %v676
        %1650 = vmatprep.subr.mxu0 0.0
        %1651 = vmatpush1.msra.mxu0 %v677
        %1652 = vmatprep.subr.mxu0 0.0
        %1653 = vmatpush1.msra.mxu0 %v678
        %1654 = vmatprep.subr.mxu0 0.0
        %1655 = vmatpush1.msra.mxu0 %v679
        %1656 = vmatprep.subr.mxu0 0.0
        %1657 = vmatpush1.msra.mxu0 %v680
        %1658 = vmatprep.subr.mxu0 0.0
        %1659 = vmatpush1.msra.mxu0 %v681
        %1660 = vmatprep.subr.mxu0 0.0
        %1661 = vmatpush1.msra.mxu0 %v682
        %1662 = vmatprep.subr.mxu0 0.0
        %1663 = vmatpush1.msra.mxu0 %v683
        %1664 = vmatprep.subr.mxu0 0.0
        %1665 = vmatpush1.msra.mxu0 %v684
        %1666 = vmatprep.subr.mxu0 0.0
        %1667 = vmatpush1.msra.mxu0 %v685
        %1668 = vmatprep.subr.mxu0 0.0
        %1669 = vmatpush1.msra.mxu0 %v686
        %1670 = vmatprep.subr.mxu0 0.0
        %1671 = vmatpush1.msra.mxu0 %v687
        %1672 = vmatprep.subr.mxu0 0.0
        %1673 = vmatpush1.msra.mxu0 %v688
        %1674 = vmatprep.subr.mxu0 0.0
        %1675 = vmatpush1.msra.mxu0 %v689
        %1676 = vmatprep.subr.mxu0 0.0
        %1677 = vmatpush1.msra.mxu0 %v690
        %1678 = vmatprep.subr.mxu0 0.0
        %1679 = vmatpush1.msra.mxu0 %v691
        %1680 = vmatprep.subr.mxu0 0.0
        %1681 = vmatpush1.msra.mxu0 %v692
        %1682 = vmatprep.subr.mxu0 0.0
        %1683 = vmatpush1.msra.mxu0 %v693
        %1684 = vmatprep.subr.mxu0 0.0
        %1685 = vmatpush1.msra.mxu0 %v694
        %1686 = vmatprep.subr.mxu0 0.0
        %1687 = vmatpush1.msra.mxu0 %v695
        %1688 = vmatprep.subr.mxu0 0.0
        %1689 = vmatpush1.msra.mxu0 %v696
        %1690 = vmatprep.subr.mxu0 0.0
        %1691 = vmatpush1.msra.mxu0 %v697
        %1692 = vmatprep.mubr.f32.mxu0 %v1278
        %1693 = vmatmul.mubr.f32.gmra.mrb[0].mxu0 %v1276
        %v1694 = vpop.f32.mrb[0].mxu0
        %v1695 = vadd.f32 0.0, %v1694
        %v1696 = vpop.f32.mrb[0].mxu0
        %1697 = vmatprep.mubr.f32.mxu0 %v1282
        %1698 = vmatmul.mubr.f32.gmra.mrb[0].mxu0 %v1280
        %v1699 = vpop.f32.mrb[0].mxu0
        %v1700 = vadd.f32 0.0, %v1699
        %v1701 = vpop.f32.mrb[0].mxu0
        %1702 = vmatprep.mubr.f32.mxu0 %v1286
        %1703 = vmatmul.mubr.f32.gmra.mrb[0].mxu0 %v1284
        %v1704 = vpop.f32.mrb[0].mxu0
        %v1705 = vadd.f32 0.0, %v1704
        %v1706 = vpop.f32.mrb[0].mxu0
        %1707 = vmatprep.mubr.f32.mxu0 %v1290
        %1708 = vmatmul.mubr.f32.gmra.mrb[0].mxu0 %v1288
        %v1709 = vpop.f32.mrb[0].mxu0
        %v1710 = vadd.f32 0.0, %v1709
        %v1711 = vpop.f32.mrb[0].mxu0
        %1712 = vmatprep.mubr.f32.mxu0 %v1294
        %1713 = vmatmul.mubr.f32.gmra.mrb[0].mxu0 %v1292
        %v1714 = vpop.f32.mrb[0].mxu0
        %v1715 = vadd.f32 0.0, %v1714
        %v1716 = vpop.f32.mrb[0].mxu0
        %1717 = vmatprep.mubr.f32.mxu0 %v1298
        %1718 = vmatmul.mubr.f32.gmra.mrb[0].mxu0 %v1296
        %v1719 = vpop.f32.mrb[0].mxu0
        %v1720 = vadd.f32 0.0, %v1719
        %v1721 = vpop.f32.mrb[0].mxu0
        %1722 = vmatprep.mubr.f32.mxu0 %v1302
        %1723 = vmatmul.mubr.f32.gmra.mrb[0].mxu0 %v1300
        %v1724 = vpop.f32.mrb[0].mxu0
        %v1725 = vadd.f32 0.0, %v1724
        %v1726 = vpop.f32.mrb[0].mxu0
        %1727 = vmatprep.mubr.f32.mxu0 %v1306
        %1728 = vmatmul.mubr.f32.gmra.mrb[0].mxu0 %v1304
        %v1729 = vpop.f32.mrb[0].mxu0
        %v1730 = vadd.f32 0.0, %v1729
        %v1731 = vpop.f32.mrb[0].mxu0
        %1732 = vmatprep.mubr.f32.mxu0 %v1310
        %1733 = vmatmul.mubr.f32.gmra.mrb[0].mxu0 %v1308
        %v1734 = vpop.f32.mrb[0].mxu0
        %v1735 = vadd.f32 0.0, %v1734
        %v1736 = vpop.f32.mrb[0].mxu0
        %1737 = vmatprep.mubr.f32.mxu0 %v1314
        %1738 = vmatmul.mubr.f32.gmra.mrb[0].mxu0 %v1312
        %v1739 = vpop.f32.mrb[0].mxu0
        %v1740 = vadd.f32 0.0, %v1739
        %v1741 = vpop.f32.mrb[0].mxu0
        %1742 = vmatprep.mubr.f32.mxu0 %v1318
        %1743 = vmatmul.mubr.f32.gmra.mrb[0].mxu0 %v1316
        %v1744 = vpop.f32.mrb[0].mxu0
        %v1745 = vadd.f32 0.0, %v1744
        %v1746 = vpop.f32.mrb[0].mxu0
        %1747 = vmatprep.mubr.f32.mxu0 %v1322
        %1748 = vmatmul.mubr.f32.gmra.mrb[0].mxu0 %v1320
        %v1749 = vpop.f32.mrb[0].mxu0
        %v1750 = vadd.f32 0.0, %v1749
        %v1751 = vpop.f32.mrb[0].mxu0
        %1752 = vmatprep.mubr.f32.mxu0 %v1326
        %1753 = vmatmul.mubr.f32.gmra.mrb[0].mxu0 %v1324
        %v1754 = vpop.f32.mrb[0].mxu0
        %v1755 = vadd.f32 0.0, %v1754
        %v1756 = vpop.f32.mrb[0].mxu0
        %1757 = vmatprep.mubr.f32.mxu0 %v1330
        %1758 = vmatmul.mubr.f32.gmra.mrb[0].mxu0 %v1328
        %v1759 = vpop.f32.mrb[0].mxu0
        %v1760 = vadd.f32 0.0, %v1759
        %v1761 = vpop.f32.mrb[0].mxu0
        %1762 = vmatprep.mubr.f32.mxu0 %v1334
        %1763 = vmatmul.mubr.f32.gmra.mrb[0].mxu0 %v1332
        %v1764 = vpop.f32.mrb[0].mxu0
        %v1765 = vadd.f32 0.0, %v1764
        %v1766 = vpop.f32.mrb[0].mxu0
        %1767 = vmatprep.mubr.f32.mxu0 %v1338
        %1768 = vmatmul.mubr.f32.gmra.mrb[0].mxu0 %v1336
        %v1769 = vpop.f32.mrb[0].mxu0
        %v1770 = vadd.f32 0.0, %v1769
        %v1771 = vpop.f32.mrb[0].mxu0
        %1772 = vmatprep.mubr.f32.mxu0 %v1342
        %1773 = vmatmul.mubr.f32.gmra.mrb[0].mxu0 %v1340
        %v1774 = vpop.f32.mrb[0].mxu0
        %v1775 = vadd.f32 0.0, %v1774
        %v1776 = vpop.f32.mrb[0].mxu0
        %1777 = vmatprep.mubr.f32.mxu0 %v1346
        %1778 = vmatmul.mubr.f32.gmra.mrb[0].mxu0 %v1344
        %v1779 = vpop.f32.mrb[0].mxu0
        %v1780 = vadd.f32 0.0, %v1779
        %v1781 = vpop.f32.mrb[0].mxu0
        %1782 = vmatprep.mubr.f32.mxu0 %v1350
        %1783 = vmatmul.mubr.f32.gmra.mrb[0].mxu0 %v1348
        %v1784 = vpop.f32.mrb[0].mxu0
        %v1785 = vadd.f32 0.0, %v1784
        %v1786 = vpop.f32.mrb[0].mxu0
        %1787 = vmatprep.mubr.f32.mxu0 %v1354
        %1788 = vmatmul.mubr.f32.gmra.mrb[0].mxu0 %v1352
        %v1789 = vpop.f32.mrb[0].mxu0
        %v1790 = vadd.f32 0.0, %v1789
        %v1791 = vpop.f32.mrb[0].mxu0
        %1792 = vmatprep.mubr.f32.mxu0 %v1358
        %1793 = vmatmul.mubr.f32.gmra.mrb[0].mxu0 %v1356
        %v1794 = vpop.f32.mrb[0].mxu0
        %v1795 = vadd.f32 0.0, %v1794
        %v1796 = vpop.f32.mrb[0].mxu0
        %1797 = vmatprep.mubr.f32.mxu0 %v1362
        %1798 = vmatmul.mubr.f32.gmra.mrb[0].mxu0 %v1360
        %v1799 = vpop.f32.mrb[0].mxu0
        %v1800 = vadd.f32 0.0, %v1799
        %v1801 = vpop.f32.mrb[0].mxu0
        %1802 = vmatprep.mubr.f32.mxu0 %v1366
        %1803 = vmatmul.mubr.f32.gmra.mrb[0].mxu0 %v1364
        %v1804 = vpop.f32.mrb[0].mxu0
        %v1805 = vadd.f32 0.0, %v1804
        %v1806 = vpop.f32.mrb[0].mxu0
        %1807 = vmatprep.mubr.f32.mxu0 %v1370
        %1808 = vmatmul.mubr.f32.gmra.mrb[0].mxu0 %v1368
        %v1809 = vpop.f32.mrb[0].mxu0
        %v1810 = vadd.f32 0.0, %v1809
        %v1811 = vpop.f32.mrb[0].mxu0
        %1812 = vmatprep.mubr.f32.mxu0 %v1374
        %1813 = vmatmul.mubr.f32.gmra.mrb[0].mxu0 %v1372
        %v1814 = vpop.f32.mrb[0].mxu0
        %v1815 = vadd.f32 0.0, %v1814
        %v1816 = vpop.f32.mrb[0].mxu0
        %1817 = vmatprep.mubr.f32.mxu0 %v1378
        %1818 = vmatmul.mubr.f32.gmra.mrb[0].mxu0 %v1376
        %v1819 = vpop.f32.mrb[0].mxu0
        %v1820 = vadd.f32 0.0, %v1819
        %v1821 = vpop.f32.mrb[0].mxu0
        %1822 = vmatprep.mubr.f32.mxu0 %v1382
        %1823 = vmatmul.mubr.f32.gmra.mrb[0].mxu0 %v1380
        %v1824 = vpop.f32.mrb[0].mxu0
        %v1825 = vadd.f32 0.0, %v1824
        %v1826 = vpop.f32.mrb[0].mxu0
        %1827 = vmatprep.mubr.f32.mxu0 %v1386
        %1828 = vmatmul.mubr.f32.gmra.mrb[0].mxu0 %v1384
        %v1829 = vpop.f32.mrb[0].mxu0
        %v1830 = vadd.f32 0.0, %v1829
        %v1831 = vpop.f32.mrb[0].mxu0
        %1832 = vmatprep.mubr.f32.mxu0 %v1390
        %1833 = vmatmul.mubr.f32.gmra.mrb[0].mxu0 %v1388
        %v1834 = vpop.f32.mrb[0].mxu0
        %v1835 = vadd.f32 0.0, %v1834
        %v1836 = vpop.f32.mrb[0].mxu0
        %1837 = vmatprep.mubr.f32.mxu0 %v1394
        %1838 = vmatmul.mubr.f32.gmra.mrb[0].mxu0 %v1392
        %v1839 = vpop.f32.mrb[0].mxu0
        %v1840 = vadd.f32 0.0, %v1839
        %v1841 = vpop.f32.mrb[0].mxu0
        %1842 = vmatprep.mubr.f32.mxu0 %v1398
        %1843 = vmatmul.mubr.f32.gmra.mrb[0].mxu0 %v1396
        %v1844 = vpop.f32.mrb[0].mxu0
        %v1845 = vadd.f32 0.0, %v1844
        %v1846 = vpop.f32.mrb[0].mxu0
        %1847 = vmatprep.mubr.f32.mxu0 %v1402
        %1848 = vmatmul.mubr.f32.gmra.mrb[0].mxu0 %v1400
        %v1849 = vpop.f32.mrb[0].mxu0
        %v1850 = vadd.f32 0.0, %v1849
        %v1851 = vpop.f32.mrb[0].mxu0
        %1852 = vdwg.mxu0
        %v1853 = vadd.f32 %v1596, %v1695
        %v1854 = vadd.f32 %v1597, %v1700
        %v1855 = vadd.f32 %v1598, %v1705
        %v1856 = vadd.f32 %v1599, %v1710
        %v1857 = vadd.f32 %v1600, %v1715
        %v1858 = vadd.f32 %v1601, %v1720
        %v1859 = vadd.f32 %v1602, %v1725
        %v1860 = vadd.f32 %v1603, %v1730
        %v1861 = vadd.f32 %v1604, %v1735
        %v1862 = vadd.f32 %v1605, %v1740
        %v1863 = vadd.f32 %v1606, %v1745
        %v1864 = vadd.f32 %v1607, %v1750
        %v1865 = vadd.f32 %v1608, %v1755
        %v1866 = vadd.f32 %v1609, %v1760
        %v1867 = vadd.f32 %v1610, %v1765
        %v1868 = vadd.f32 %v1611, %v1770
        %v1869 = vadd.f32 %v1612, %v1775
        %v1870 = vadd.f32 %v1613, %v1780
        %v1871 = vadd.f32 %v1614, %v1785
        %v1872 = vadd.f32 %v1615, %v1790
        %v1873 = vadd.f32 %v1616, %v1795
        %v1874 = vadd.f32 %v1617, %v1800
        %v1875 = vadd.f32 %v1618, %v1805
        %v1876 = vadd.f32 %v1619, %v1810
        %v1877 = vadd.f32 %v1620, %v1815
        %v1878 = vadd.f32 %v1621, %v1820
        %v1879 = vadd.f32 %v1622, %v1825
        %v1880 = vadd.f32 %v1623, %v1830
        %v1881 = vadd.f32 %v1624, %v1835
        %v1882 = vadd.f32 %v1625, %v1840
        %v1883 = vadd.f32 %v1626, %v1845
        %v1884 = vadd.f32 %v1627, %v1850
        %1885 = vst [vmem:[#allocation3] sm:$0xff] %v1853
        %1886 = vst [vmem:[#allocation3 + $0x8] sm:$0xff] %v1854
        %1887 = vst [vmem:[#allocation3 + $0x10] sm:$0xff] %v1855
        %1888 = vst [vmem:[#allocation3 + $0x18] sm:$0xff] %v1856
        %1889 = vst [vmem:[#allocation3 + $0x20] sm:$0xff] %v1857
        %1890 = vst [vmem:[#allocation3 + $0x28] sm:$0xff] %v1858
        %1891 = vst [vmem:[#allocation3 + $0x30] sm:$0xff] %v1859
        %1892 = vst [vmem:[#allocation3 + $0x38] sm:$0xff] %v1860
        %1893 = vst [vmem:[#allocation3 + $0x40] sm:$0xff] %v1861
        %1894 = vst [vmem:[#allocation3 + $0x48] sm:$0xff] %v1862
        %1895 = vst [vmem:[#allocation3 + $0x50] sm:$0xff] %v1863
        %1896 = vst [vmem:[#allocation3 + $0x58] sm:$0xff] %v1864
        %1897 = vst [vmem:[#allocation3 + $0x60] sm:$0xff] %v1865
        %1898 = vst [vmem:[#allocation3 + $0x68] sm:$0xff] %v1866
        %1899 = vst [vmem:[#allocation3 + $0x70] sm:$0xff] %v1867
        %1900 = vst [vmem:[#allocation3 + $0x78] sm:$0xff] %v1868
        %1901 = vst [vmem:[#allocation3 + $0x80] sm:$0xff] %v1869
        %1902 = vst [vmem:[#allocation3 + $0x88] sm:$0xff] %v1870
        %1903 = vst [vmem:[#allocation3 + $0x90] sm:$0xff] %v1871
        %1904 = vst [vmem:[#allocation3 + $0x98] sm:$0xff] %v1872
        %1905 = vst [vmem:[#allocation3 + $0xa0] sm:$0xff] %v1873
        %1906 = vst [vmem:[#allocation3 + $0xa8] sm:$0xff] %v1874
        %1907 = vst [vmem:[#allocation3 + $0xb0] sm:$0xff] %v1875
        %1908 = vst [vmem:[#allocation3 + $0xb8] sm:$0xff] %v1876
        %1909 = vst [vmem:[#allocation3 + $0xc0] sm:$0xff] %v1877
        %1910 = vst [vmem:[#allocation3 + $0xc8] sm:$0xff] %v1878
        %1911 = vst [vmem:[#allocation3 + $0xd0] sm:$0xff] %v1879
        %1912 = vst [vmem:[#allocation3 + $0xd8] sm:$0xff] %v1880
        %1913 = vst [vmem:[#allocation3 + $0xe0] sm:$0xff] %v1881
        %1914 = vst [vmem:[#allocation3 + $0xe8] sm:$0xff] %v1882
        %1915 = vst [vmem:[#allocation3 + $0xf0] sm:$0xff] %v1883
        %1916 = vst [vmem:[#allocation3 + $0xf8] sm:$0xff] %v1884
        %p1917 = scmp.eq.s32.totalorder %s23, 1
        // Predicated region
        $region41: #{tpu_custom_call.1} parent=35 // pred_check
          %p1918 = pneg %p1917
        $region42: #{tpu_custom_call.1} parent=35 // pred_check_branch
          %1920 = sbr.rel (%p1918) target = $region44
        $region43: #{tpu_custom_call.1} parent=35 // pred_region
          %v1921 = vld [vmem:[#allocation2] sm:$0xff]
          %v1922 = vld [vmem:[#allocation2 + $0x8] sm:$0xff]
          %v1923 = vld [vmem:[#allocation2 + $0x10] sm:$0xff]
          %v1924 = vld [vmem:[#allocation2 + $0x18] sm:$0xff]
          %v1925 = vld [vmem:[#allocation2 + $0x20] sm:$0xff]
          %v1926 = vld [vmem:[#allocation2 + $0x28] sm:$0xff]
          %v1927 = vld [vmem:[#allocation2 + $0x30] sm:$0xff]
          %v1928 = vld [vmem:[#allocation2 + $0x38] sm:$0xff]
          %v1929 = vld [vmem:[#allocation2 + $0x40] sm:$0xff]
          %v1930 = vld [vmem:[#allocation2 + $0x48] sm:$0xff]
          %v1931 = vld [vmem:[#allocation2 + $0x50] sm:$0xff]
          %v1932 = vld [vmem:[#allocation2 + $0x58] sm:$0xff]
          %v1933 = vld [vmem:[#allocation2 + $0x60] sm:$0xff]
          %v1934 = vld [vmem:[#allocation2 + $0x68] sm:$0xff]
          %v1935 = vld [vmem:[#allocation2 + $0x70] sm:$0xff]
          %v1936 = vld [vmem:[#allocation2 + $0x78] sm:$0xff]
          %v1937 = vld [vmem:[#allocation2 + $0x80] sm:$0xff]
          %v1938 = vld [vmem:[#allocation2 + $0x88] sm:$0xff]
          %v1939 = vld [vmem:[#allocation2 + $0x90] sm:$0xff]
          %v1940 = vld [vmem:[#allocation2 + $0x98] sm:$0xff]
          %v1941 = vld [vmem:[#allocation2 + $0xa0] sm:$0xff]
          %v1942 = vld [vmem:[#allocation2 + $0xa8] sm:$0xff]
          %v1943 = vld [vmem:[#allocation2 + $0xb0] sm:$0xff]
          %v1944 = vld [vmem:[#allocation2 + $0xb8] sm:$0xff]
          %v1945 = vld [vmem:[#allocation2 + $0xc0] sm:$0xff]
          %v1946 = vld [vmem:[#allocation2 + $0xc8] sm:$0xff]
          %v1947 = vld [vmem:[#allocation2 + $0xd0] sm:$0xff]
          %v1948 = vld [vmem:[#allocation2 + $0xd8] sm:$0xff]
          %v1949 = vld [vmem:[#allocation2 + $0xe0] sm:$0xff]
          %v1950 = vld [vmem:[#allocation2 + $0xe8] sm:$0xff]
          %v1951 = vld [vmem:[#allocation2 + $0xf0] sm:$0xff]
          %v1952 = vld [vmem:[#allocation2 + $0xf8] sm:$0xff]
          %v1953 = vrcp.pop %v1921
          %v1954 = vrcp.pop %v1922
          %v1955 = vrcp.pop %v1923
          %v1956 = vrcp.pop %v1924
          %v1957 = vrcp.pop %v1925
          %v1958 = vrcp.pop %v1926
          %v1959 = vrcp.pop %v1927
          %v1960 = vrcp.pop %v1928
          %v1961 = vrcp.pop %v1929
          %v1962 = vrcp.pop %v1930
          %v1963 = vrcp.pop %v1931
          %v1964 = vrcp.pop %v1932
          %v1965 = vrcp.pop %v1933
          %v1966 = vrcp.pop %v1934
          %v1967 = vrcp.pop %v1935
          %v1968 = vrcp.pop %v1936
          %v1969 = vrcp.pop %v1937
          %v1970 = vrcp.pop %v1938
          %v1971 = vrcp.pop %v1939
          %v1972 = vrcp.pop %v1940
          %v1973 = vrcp.pop %v1941
          %v1974 = vrcp.pop %v1942
          %v1975 = vrcp.pop %v1943
          %v1976 = vrcp.pop %v1944
          %v1977 = vrcp.pop %v1945
          %v1978 = vrcp.pop %v1946
          %v1979 = vrcp.pop %v1947
          %v1980 = vrcp.pop %v1948
          %v1981 = vrcp.pop %v1949
          %v1982 = vrcp.pop %v1950
          %v1983 = vrcp.pop %v1951
          %v1984 = vrcp.pop %v1952
          %v1985 = vld [vmem:[#allocation3] sm:$0xff]
          %v1986 = vld [vmem:[#allocation3 + $0x8] sm:$0xff]
          %v1987 = vld [vmem:[#allocation3 + $0x10] sm:$0xff]
          %v1988 = vld [vmem:[#allocation3 + $0x18] sm:$0xff]
          %v1989 = vld [vmem:[#allocation3 + $0x20] sm:$0xff]
          %v1990 = vld [vmem:[#allocation3 + $0x28] sm:$0xff]
          %v1991 = vld [vmem:[#allocation3 + $0x30] sm:$0xff]
          %v1992 = vld [vmem:[#allocation3 + $0x38] sm:$0xff]
          %v1993 = vld [vmem:[#allocation3 + $0x40] sm:$0xff]
          %v1994 = vld [vmem:[#allocation3 + $0x48] sm:$0xff]
          %v1995 = vld [vmem:[#allocation3 + $0x50] sm:$0xff]
          %v1996 = vld [vmem:[#allocation3 + $0x58] sm:$0xff]
          %v1997 = vld [vmem:[#allocation3 + $0x60] sm:$0xff]
          %v1998 = vld [vmem:[#allocation3 + $0x68] sm:$0xff]
          %v1999 = vld [vmem:[#allocation3 + $0x70] sm:$0xff]
          %v2000 = vld [vmem:[#allocation3 + $0x78] sm:$0xff]
          %v2001 = vld [vmem:[#allocation3 + $0x80] sm:$0xff]
          %v2002 = vld [vmem:[#allocation3 + $0x88] sm:$0xff]
          %v2003 = vld [vmem:[#allocation3 + $0x90] sm:$0xff]
          %v2004 = vld [vmem:[#allocation3 + $0x98] sm:$0xff]
          %v2005 = vld [vmem:[#allocation3 + $0xa0] sm:$0xff]
          %v2006 = vld [vmem:[#allocation3 + $0xa8] sm:$0xff]
          %v2007 = vld [vmem:[#allocation3 + $0xb0] sm:$0xff]
          %v2008 = vld [vmem:[#allocation3 + $0xb8] sm:$0xff]
          %v2009 = vld [vmem:[#allocation3 + $0xc0] sm:$0xff]
          %v2010 = vld [vmem:[#allocation3 + $0xc8] sm:$0xff]
          %v2011 = vld [vmem:[#allocation3 + $0xd0] sm:$0xff]
          %v2012 = vld [vmem:[#allocation3 + $0xd8] sm:$0xff]
          %v2013 = vld [vmem:[#allocation3 + $0xe0] sm:$0xff]
          %v2014 = vld [vmem:[#allocation3 + $0xe8] sm:$0xff]
          %v2015 = vld [vmem:[#allocation3 + $0xf0] sm:$0xff]
          %v2016 = vld [vmem:[#allocation3 + $0xf8] sm:$0xff]
          %2018 = vset.pattern.permute.xlu0 0
          %2019 = vperm.xlu0 %2018, %v1953
          %v2020 = vpop.permute.xlu0 %2019
          %2023 = vset.pattern.permute.xlu0 0
          %2024 = vperm.xlu0 %2023, %v1954
          %v2025 = vpop.permute.xlu0 %2024
          %2028 = vset.pattern.permute.xlu0 0
          %2029 = vperm.xlu0 %2028, %v1955
          %v2030 = vpop.permute.xlu0 %2029
          %2033 = vset.pattern.permute.xlu0 0
          %2034 = vperm.xlu0 %2033, %v1956
          %v2035 = vpop.permute.xlu0 %2034
          %2038 = vset.pattern.permute.xlu0 0
          %2039 = vperm.xlu0 %2038, %v1957
          %v2040 = vpop.permute.xlu0 %2039
          %2043 = vset.pattern.permute.xlu0 0
          %2044 = vperm.xlu0 %2043, %v1958
          %v2045 = vpop.permute.xlu0 %2044
          %2048 = vset.pattern.permute.xlu0 0
          %2049 = vperm.xlu0 %2048, %v1959
          %v2050 = vpop.permute.xlu0 %2049
          %2053 = vset.pattern.permute.xlu0 0
          %2054 = vperm.xlu0 %2053, %v1960
          %v2055 = vpop.permute.xlu0 %2054
          %2058 = vset.pattern.permute.xlu0 0
          %2059 = vperm.xlu0 %2058, %v1961
          %v2060 = vpop.permute.xlu0 %2059
          %2063 = vset.pattern.permute.xlu0 0
          %2064 = vperm.xlu0 %2063, %v1962
          %v2065 = vpop.permute.xlu0 %2064
          %2068 = vset.pattern.permute.xlu0 0
          %2069 = vperm.xlu0 %2068, %v1963
          %v2070 = vpop.permute.xlu0 %2069
          %2073 = vset.pattern.permute.xlu0 0
          %2074 = vperm.xlu0 %2073, %v1964
          %v2075 = vpop.permute.xlu0 %2074
          %2078 = vset.pattern.permute.xlu0 0
          %2079 = vperm.xlu0 %2078, %v1965
          %v2080 = vpop.permute.xlu0 %2079
          %2083 = vset.pattern.permute.xlu0 0
          %2084 = vperm.xlu0 %2083, %v1966
          %v2085 = vpop.permute.xlu0 %2084
          %2088 = vset.pattern.permute.xlu0 0
          %2089 = vperm.xlu0 %2088, %v1967
          %v2090 = vpop.permute.xlu0 %2089
          %2093 = vset.pattern.permute.xlu0 0
          %2094 = vperm.xlu0 %2093, %v1968
          %v2095 = vpop.permute.xlu0 %2094
          %2098 = vset.pattern.permute.xlu0 0
          %2099 = vperm.xlu0 %2098, %v1969
          %v2100 = vpop.permute.xlu0 %2099
          %2103 = vset.pattern.permute.xlu0 0
          %2104 = vperm.xlu0 %2103, %v1970
          %v2105 = vpop.permute.xlu0 %2104
          %2108 = vset.pattern.permute.xlu0 0
          %2109 = vperm.xlu0 %2108, %v1971
          %v2110 = vpop.permute.xlu0 %2109
          %2113 = vset.pattern.permute.xlu0 0
          %2114 = vperm.xlu0 %2113, %v1972
          %v2115 = vpop.permute.xlu0 %2114
          %2118 = vset.pattern.permute.xlu0 0
          %2119 = vperm.xlu0 %2118, %v1973
          %v2120 = vpop.permute.xlu0 %2119
          %2123 = vset.pattern.permute.xlu0 0
          %2124 = vperm.xlu0 %2123, %v1974
          %v2125 = vpop.permute.xlu0 %2124
          %2128 = vset.pattern.permute.xlu0 0
          %2129 = vperm.xlu0 %2128, %v1975
          %v2130 = vpop.permute.xlu0 %2129
          %2133 = vset.pattern.permute.xlu0 0
          %2134 = vperm.xlu0 %2133, %v1976
          %v2135 = vpop.permute.xlu0 %2134
          %2138 = vset.pattern.permute.xlu0 0
          %2139 = vperm.xlu0 %2138, %v1977
          %v2140 = vpop.permute.xlu0 %2139
          %2143 = vset.pattern.permute.xlu0 0
          %2144 = vperm.xlu0 %2143, %v1978
          %v2145 = vpop.permute.xlu0 %2144
          %2148 = vset.pattern.permute.xlu0 0
          %2149 = vperm.xlu0 %2148, %v1979
          %v2150 = vpop.permute.xlu0 %2149
          %2153 = vset.pattern.permute.xlu0 0
          %2154 = vperm.xlu0 %2153, %v1980
          %v2155 = vpop.permute.xlu0 %2154
          %2158 = vset.pattern.permute.xlu0 0
          %2159 = vperm.xlu0 %2158, %v1981
          %v2160 = vpop.permute.xlu0 %2159
          %2163 = vset.pattern.permute.xlu0 0
          %2164 = vperm.xlu0 %2163, %v1982
          %v2165 = vpop.permute.xlu0 %2164
          %2168 = vset.pattern.permute.xlu0 0
          %2169 = vperm.xlu0 %2168, %v1983
          %v2170 = vpop.permute.xlu0 %2169
          %2173 = vset.pattern.permute.xlu0 0
          %2174 = vperm.xlu0 %2173, %v1984
          %v2175 = vpop.permute.xlu0 %2174
          %v2177 = vmul.f32 %v1985, %v2020
          %v2178 = vmul.f32 %v1986, %v2025
          %v2179 = vmul.f32 %v1987, %v2030
          %v2180 = vmul.f32 %v1988, %v2035
          %v2181 = vmul.f32 %v1989, %v2040
          %v2182 = vmul.f32 %v1990, %v2045
          %v2183 = vmul.f32 %v1991, %v2050
          %v2184 = vmul.f32 %v1992, %v2055
          %v2185 = vmul.f32 %v1993, %v2060
          %v2186 = vmul.f32 %v1994, %v2065
          %v2187 = vmul.f32 %v1995, %v2070
          %v2188 = vmul.f32 %v1996, %v2075
          %v2189 = vmul.f32 %v1997, %v2080
          %v2190 = vmul.f32 %v1998, %v2085
          %v2191 = vmul.f32 %v1999, %v2090
          %v2192 = vmul.f32 %v2000, %v2095
          %v2193 = vmul.f32 %v2001, %v2100
          %v2194 = vmul.f32 %v2002, %v2105
          %v2195 = vmul.f32 %v2003, %v2110
          %v2196 = vmul.f32 %v2004, %v2115
          %v2197 = vmul.f32 %v2005, %v2120
          %v2198 = vmul.f32 %v2006, %v2125
          %v2199 = vmul.f32 %v2007, %v2130
          %v2200 = vmul.f32 %v2008, %v2135
          %v2201 = vmul.f32 %v2009, %v2140
          %v2202 = vmul.f32 %v2010, %v2145
          %v2203 = vmul.f32 %v2011, %v2150
          %v2204 = vmul.f32 %v2012, %v2155
          %v2205 = vmul.f32 %v2013, %v2160
          %v2206 = vmul.f32 %v2014, %v2165
          %v2207 = vmul.f32 %v2015, %v2170
          %v2208 = vmul.f32 %v2016, %v2175
          %2209 = vst [vmem:[%s251] sm:$0xff] %v2177
          %2210 = vst [vmem:[%s251 + $0x8] sm:$0xff] %v2178
          %2211 = vst [vmem:[%s251 + $0x10] sm:$0xff] %v2179
          %2212 = vst [vmem:[%s251 + $0x18] sm:$0xff] %v2180
          %2213 = vst [vmem:[%s251 + $0x20] sm:$0xff] %v2181
          %2214 = vst [vmem:[%s251 + $0x28] sm:$0xff] %v2182
          %2215 = vst [vmem:[%s251 + $0x30] sm:$0xff] %v2183
          %2216 = vst [vmem:[%s251 + $0x38] sm:$0xff] %v2184
          %2217 = vst [vmem:[%s251 + $0x40] sm:$0xff] %v2185
          %2218 = vst [vmem:[%s251 + $0x48] sm:$0xff] %v2186
          %2219 = vst [vmem:[%s251 + $0x50] sm:$0xff] %v2187
          %2220 = vst [vmem:[%s251 + $0x58] sm:$0xff] %v2188
          %2221 = vst [vmem:[%s251 + $0x60] sm:$0xff] %v2189
          %2222 = vst [vmem:[%s251 + $0x68] sm:$0xff] %v2190
          %2223 = vst [vmem:[%s251 + $0x70] sm:$0xff] %v2191
          %2224 = vst [vmem:[%s251 + $0x78] sm:$0xff] %v2192
          %2225 = vst [vmem:[%s251 + $0x80] sm:$0xff] %v2193
          %2226 = vst [vmem:[%s251 + $0x88] sm:$0xff] %v2194
          %2227 = vst [vmem:[%s251 + $0x90] sm:$0xff] %v2195
          %2228 = vst [vmem:[%s251 + $0x98] sm:$0xff] %v2196
          %2229 = vst [vmem:[%s251 + $0xa0] sm:$0xff] %v2197
          %2230 = vst [vmem:[%s251 + $0xa8] sm:$0xff] %v2198
          %2231 = vst [vmem:[%s251 + $0xb0] sm:$0xff] %v2199
          %2232 = vst [vmem:[%s251 + $0xb8] sm:$0xff] %v2200
          %2233 = vst [vmem:[%s251 + $0xc0] sm:$0xff] %v2201
          %2234 = vst [vmem:[%s251 + $0xc8] sm:$0xff] %v2202
          %2235 = vst [vmem:[%s251 + $0xd0] sm:$0xff] %v2203
          %2236 = vst [vmem:[%s251 + $0xd8] sm:$0xff] %v2204
          %2237 = vst [vmem:[%s251 + $0xe0] sm:$0xff] %v2205
          %2238 = vst [vmem:[%s251 + $0xe8] sm:$0xff] %v2206
          %2239 = vst [vmem:[%s251 + $0xf0] sm:$0xff] %v2207
          %2240 = vst [vmem:[%s251 + $0xf8] sm:$0xff] %v2208
        $region44: #{tpu_custom_call.1} parent=35 // pred_fallthru
          _
        %s2241 = sand.u32 %s142, 1
        %s2242 = scalar_lea.sflag [#allocation6], %s2241
        %s2243 = sand.u32 %s142, 1
        %s2244 = smul.addr %s2243, 256
        %s2245 = scalar_lea.vmem [#allocation5], %s2244
        // Predicated region
        $region45: #{tpu_custom_call.1} parent=35 // pred_check
          %p2246 = pneg %p152
        $region46: #{tpu_custom_call.1} parent=35 // pred_check_branch
          %2248 = sbr.rel (%p2246) target = $region48
        $region47: #{tpu_custom_call.1} parent=35 // pred_region
          %s2249 = smul.u32 32, %s22
          %s2251 = ssub.s32 4096, 4096
          %2252 = vsyncadd %s2242, %s2251
          %s2253 = smul.addr %s2249, 128
          %s2254 = scalar_lea.hbm %s4, %s2253
          %s2255 = sshll.u32 %s2245, 4
          %s2256 = int_to_ptr.vmem [resolvable:$true] %s2255
          %2261 = dma.vmem_to_hbm [thread:$0]  %s2256, 4096, %s2254, %s2242, 128, 128, 8
        $region48: #{tpu_custom_call.1} parent=35 // pred_fallthru
          _
      $region36: #{tpu_custom_call.1} parent=5 // pred_fallthru
        _
      %p2262 = scmp.le.s32.totalorder 2, %s13
      // Predicated region
      $region49: #{tpu_custom_call.1} parent=5 // pred_check
        %p2263 = pneg %p2262
      $region50: #{tpu_custom_call.1} parent=5 // pred_check_branch
        %2265 = sbr.rel (%p2263) target = $region52
      $region51: #{tpu_custom_call.1} parent=5 // pred_region
        %s2266 = ssub.s32 %s13, 2
        // Predicated region
        $region53: #{tpu_custom_call.1} parent=51 // pred_check
          %p2267 = pneg %p158
        $region54: #{tpu_custom_call.1} parent=51 // pred_check_branch
          %2269 = sbr.rel (%p2267) target = $region56
        $region55: #{tpu_custom_call.1} parent=51 // pred_region
          %s2270 = sand.u32 %s143, 1
          %s2271 = scalar_lea.sflag [#allocation6], %s2270
          %s2272 = sand.u32 %s143, 1
          %s2273 = smul.addr %s2272, 256
          %s2274 = scalar_lea.vmem [#allocation5], %s2273
          %2275 = dma.done %s2271, 4096
        $region56: #{tpu_custom_call.1} parent=51 // pred_fallthru
          _
      $region52: #{tpu_custom_call.1} parent=5 // pred_fallthru
        _
    $region6: #{tpu_custom_call.1} parent=1 // loop_footer
      %s17 = sadd.s32 1, %s13
    $region7: #{tpu_custom_call.1} parent=1 // loop_footer_branch
      %12 = sbr.rel target = $region3
    $region8: #{tpu_custom_call.1} parent=1 // loop_exit
      _
    %2276 = vsyncpa [#allocation6], 1
    %s2277 = scalar_lea.sflag [#allocation6], 1
    %2278 = vsyncpa %s2277, 1

</llo_original>
